<compile_context>
chip_gen: v7x
topology: tpu7x:2x2x1
jax: 0.10.0
libtpu: 0.0.40
codegen_flags: <defaults>
</compile_context>

<pallas_src>
import jax
import jax.numpy as jnp
import numpy as np
from jax.experimental import pallas as pl
from jax.experimental.pallas import tpu as pltpu


# ----------------------------- Pallas kernel ------------------------------- #

def _fused_tclstm_kernel(gx_ref, len_ref, whh_ref, wd_ref, bd_ref, out_ref):
    """Single-invocation fused bidirectional-context TC-LSTM + dense epilogue.

    Block shapes (full arrays, one grid point):
      gx_ref : [2, L*B, 4H] bf16  precomputed x @ W_ih^T + b, time-major, gate
                                  columns pre-permuted to (i, f, o, g)
      len_ref: [2, B, 1]    i32   valid sequence length per batch row
      whh_ref: [2, H, 4H]   bf16  recurrent weights (transposed, permuted)
      wd_ref : [2H, 128]    f32   dense weight, zero-padded to 128 lanes
      bd_ref : [1, 128]     f32   dense bias, zero-padded
      out_ref: [B, 128]     f32   lane-dense logits (first P lanes are real)
    """
    LB = gx_ref.shape[1]
    H = whh_ref.shape[1]
    B = len_ref.shape[1]
    L = LB // B

    # ---- hoisted loads / broadcasts (must not be re-materialized per step) ----
    gx_l = gx_ref[0].astype(jnp.float32)            # [L*B, 4H]
    gx_r = gx_ref[1].astype(jnp.float32)
    whh_l = whh_ref[0]                              # [H, 4H] bf16
    whh_r = whh_ref[1]
    lens_l = jnp.broadcast_to(len_ref[0], (B, H))   # [B, H] i32
    lens_r = jnp.broadcast_to(len_ref[1], (B, H))

    h_l = jnp.zeros((B, H), jnp.float32)
    c_l = jnp.zeros((B, H), jnp.float32)
    h_r = jnp.zeros((B, H), jnp.float32)
    c_r = jnp.zeros((B, H), jnp.float32)

    def cell(t, gx, whh, lens_b, h, c):
        # Only the recurrent matmul is on the per-step path: bf16 operands, f32 acc.
        gates = gx[t * B:(t + 1) * B, :] + jnp.dot(
            h.astype(whh.dtype), whh, preferred_element_type=jnp.float32)   # [B, 4H]
        sig = jax.nn.sigmoid(gates[:, :3 * H])      # (i, f, o) in one EUP pass
        g = jnp.tanh(gates[:, 3 * H:])
        i_g = sig[:, :H]
        f_g = sig[:, H:2 * H]
        o_g = sig[:, 2 * H:3 * H]
        c_new = f_g * c + i_g * g
        h_new = o_g * jnp.tanh(c_new)
        valid = t < lens_b                          # packed-sequence freeze mask
        return jnp.where(valid, h_new, h), jnp.where(valid, c_new, c)

    # L is small & static -> fully unrolled at trace time; the two direction chains
    # are independent, letting dir-R's MXU push overlap dir-L's gate math.
    for t in range(L):
        h_l, c_l = cell(t, gx_l, whh_l, lens_l, h_l, c_l)
        h_r, c_r = cell(t, gx_r, whh_r, lens_r, h_r, c_r)

    # Fused dense epilogue: [h_l ; h_r] @ W_dense_pad + b_pad  (lane-dense output).
    h_cat = jnp.concatenate([h_l, h_r], axis=-1)    # [B, 2H]
    out_ref[...] = jnp.dot(h_cat, wd_ref[...],
                           preferred_element_type=jnp.float32) + bd_ref[...]


def fused_lstm_dense(gx, lens, whh, wd_pad, bd_pad):
    """gx:[2,L*B,4H] bf16  lens:[2,B,1] i32  whh:[2,H,4H] bf16
       wd_pad:[2H,Ppad] f32  bd_pad:[1,Ppad] f32 -> logits [B, Ppad] f32."""
    _, LB, G4 = gx.shape
    H = whh.shape[1]
    B = lens.shape[1]
    L = LB // B
    P_pad = wd_pad.shape[1]

    flops = 2 * (2 * L * B * H * G4) + 2 * B * (2 * H) * P_pad
    transcendentals = 2 * L * B * (G4 + H)
    bytes_accessed = (gx.size * 2 + lens.size * 4 + whh.size * 2
                      + wd_pad.size * 4 + bd_pad.size * 4 + B * P_pad * 4)

    return pl.pallas_call(
        _fused_tclstm_kernel,
        out_shape=jax.ShapeDtypeStruct((B, P_pad), jnp.float32),
        grid_spec=pltpu.PrefetchScalarGridSpec(
            num_scalar_prefetch=0,
            grid=(1,),                                   # single fused invocation
            in_specs=[
                pl.BlockSpec((2, LB, G4),    lambda i: (0, 0, 0)),
                pl.BlockSpec((2, B, 1),      lambda i: (0, 0, 0)),
                pl.BlockSpec((2, H, G4),     lambda i: (0, 0, 0)),
                pl.BlockSpec((2 * H, P_pad), lambda i: (0, 0)),
                pl.BlockSpec((1, P_pad),     lambda i: (0, 0)),
            ],
            out_specs=pl.BlockSpec((B, P_pad), lambda i: (0, 0)),
        ),
        compiler_params=pltpu.CompilerParams(
            dimension_semantics=("arbitrary",)),
        cost_estimate=pl.CostEstimate(flops=flops,
                                      transcendentals=transcendentals,
                                      bytes_accessed=bytes_accessed),
    )(gx, lens, whh, wd_pad, bd_pad)


# ------------------------------ TC_LSTM forward ----------------------------- #

def tc_lstm_forward(params, x_l, x_r, target):
    emb = params["embedding"]                  # [V, E] f32
    E = emb.shape[1]
    B, L = x_l.shape
    H = params["w_hh_l"].shape[0]
    P = params["w_dense"].shape[1]

    # lengths (count of non-pad tokens, pad id == 0)
    x_l_len = jnp.sum(x_l != 0, axis=-1).astype(jnp.int32)
    x_r_len = jnp.sum(x_r != 0, axis=-1).astype(jnp.int32)
    target_len = jnp.sum(target != 0, axis=-1).astype(jnp.float32)[:, None]   # [B,1]

    # target embedding: sum over ALL target positions / #nonzero (exactly as the
    # PyTorch module does), broadcast along the sequence.
    target_emb = jnp.sum(emb[target], axis=1) / target_len                    # [B, E]
    target_rep = jnp.broadcast_to(target_emb[:, None, :], (B, L, E))

    xl_cat = jnp.concatenate([emb[x_l], target_rep], axis=-1)                 # [B, L, 2E]
    xr_cat = jnp.concatenate([emb[x_r], target_rep], axis=-1)

    # Gate-column permutation: PyTorch (i, f, g, o) -> kernel (i, f, o, g) so the
    # kernel activates with one sigmoid over [:, :3H] and one tanh over [:, 3H:].
    def reorder_gates(w):
        return jnp.concatenate([w[..., :2 * H], w[..., 3 * H:], w[..., 2 * H:3 * H]],
                               axis=-1)

    # Hoisted input projection (off the recurrent critical path): one
    # [L*B, 2E] x [2E, 4H] matmul per direction, time-major flattened rows.
    def input_proj(x_cat, w_ih_t, b):
        x_tm = jnp.transpose(x_cat, (1, 0, 2)).reshape(L * B, 2 * E)
        return jnp.dot(x_tm, reorder_gates(w_ih_t)) + reorder_gates(b)        # [L*B, 4H]

    gx = jnp.stack([input_proj(xl_cat, params["w_ih_l"], params["b_l"]),
                    input_proj(xr_cat, params["w_ih_r"], params["b_r"])])     # [2, L*B, 4H]
    gx = gx.astype(jnp.bfloat16)

    lens = jnp.stack([x_l_len, x_r_len])[:, :, None]                          # [2, B, 1]
    whh = jnp.stack([reorder_gates(params["w_hh_l"]),
                     reorder_gates(params["w_hh_r"])]).astype(jnp.bfloat16)   # [2, H, 4H]

    # Lane-dense dense layer: pad output columns to a multiple of 128.
    P_pad = max(128, -(-P // 128) * 128)
    wd_pad = jnp.zeros((2 * H, P_pad), jnp.float32).at[:, :P].set(params["w_dense"])
    bd_pad = jnp.zeros((1, P_pad), jnp.float32).at[0, :P].set(params["b_dense"])

    out = fused_lstm_dense(gx, lens, whh, wd_pad, bd_pad)                     # [B, P_pad]
    return out[:, :P]                                                         # [B, P]


# ------------------------------ pure-JAX reference -------------------------- #

def _ref_lstm_last_h(x_tbd, lengths, wih, whh, b):
    L, B, _ = x_tbd.shape
    H = whh.shape[0]
    hp = jax.lax.Precision.HIGHEST

    def step(carry, inp):
        h, c = carry
        x_t, t = inp
        gates = (jnp.dot(x_t, wih, precision=hp)
                 + jnp.dot(h, whh, precision=hp) + b)
        i = jax.nn.sigmoid(gates[:, :H])
        f = jax.nn.sigmoid(gates[:, H:2 * H])
        g = jnp.tanh(gates[:, 2 * H:3 * H])
        o = jax.nn.sigmoid(gates[:, 3 * H:])
        c_new = f * c + i * g
        h_new = o * jnp.tanh(c_new)
        m = (t < lengths)[:, None]
        return (jnp.where(m, h_new, h), jnp.where(m, c_new, c)), 0.0

    (h, _), _ = jax.lax.scan(step, (jnp.zeros((B, H)), jnp.zeros((B, H))),
                             (x_tbd, jnp.arange(L)))
    return h


def tc_lstm_reference(params, x_l, x_r, target):
    emb = params["embedding"]
    B, L = x_l.shape
    x_l_len = jnp.sum(x_l != 0, axis=-1).astype(jnp.int32)
    x_r_len = jnp.sum(x_r != 0, axis=-1).astype(jnp.int32)
    target_len = jnp.sum(target != 0, axis=-1).astype(jnp.float32)[:, None]
    target_emb = jnp.sum(emb[target], axis=1) / target_len
    E = emb.shape[1]
    target_rep = jnp.broadcast_to(target_emb[:, None, :], (B, L, E))
    xl = jnp.transpose(jnp.concatenate([emb[x_l], target_rep], -1), (1, 0, 2))
    xr = jnp.transpose(jnp.concatenate([emb[x_r], target_rep], -1), (1, 0, 2))
    h_l = _ref_lstm_last_h(xl, x_l_len, params["w_ih_l"], params["w_hh_l"], params["b_l"])
    h_r = _ref_lstm_last_h(xr, x_r_len, params["w_ih_r"], params["w_hh_r"], params["b_r"])
    h = jnp.concatenate([h_l, h_r], axis=-1)
    return jnp.dot(h, params["w_dense"], precision=jax.lax.Precision.HIGHEST) + params["b_dense"]


# --------------------------------- params ----------------------------------- #

def init_params(key, vocab, embed_dim, hidden_dim, polarities_dim):
    ks = jax.random.split(key, 9)
    s = 0.1
    d_in = 2 * embed_dim
    return {
        "embedding": s * jax.random.normal(ks[0], (vocab, embed_dim), jnp.float32),
        # left LSTM (weights stored transposed: [D_in, 4H] / [H, 4H], PyTorch gate order)
        "w_ih_l": s * jax.random.normal(ks[1], (d_in, 4 * hidden_dim), jnp.float32),
        "w_hh_l": s * jax.random.normal(ks[2], (hidden_dim, 4 * hidden_dim), jnp.float32),
        "b_l":    s * jax.random.normal(ks[3], (4 * hidden_dim,), jnp.float32),  # b_ih + b_hh combined
        # right LSTM
        "w_ih_r": s * jax.random.normal(ks[4], (d_in, 4 * hidden_dim), jnp.float32),
        "w_hh_r": s * jax.random.normal(ks[5], (hidden_dim, 4 * hidden_dim), jnp.float32),
        "b_r":    s * jax.random.normal(ks[6], (4 * hidden_dim,), jnp.float32),
        # dense: [2H, P]
        "w_dense": s * jax.random.normal(ks[7], (2 * hidden_dim, polarities_dim), jnp.float32),
        "b_dense": s * jax.random.normal(ks[8], (polarities_dim,), jnp.float32),
    }


# ----------------------------------- main ------------------------------------ #

if __name__ == "__main__":
    VOCAB, EMBED_DIM, HIDDEN_DIM, POLARITIES = 50, 32, 32, 3
    B, L, LT = 2, 8, 4

    key = jax.random.PRNGKey(0)
    pkey, kxl, kxr, ktg = jax.random.split(key, 4)
    params = init_params(pkey, VOCAB, EMBED_DIM, HIDDEN_DIM, POLARITIES)

    # deterministic token-id inputs (pad id 0 at the tail -> variable lengths)
    x_l = jax.random.randint(kxl, (B, L), 1, VOCAB, jnp.int32)
    x_r = jax.random.randint(kxr, (B, L), 1, VOCAB, jnp.int32)
    target = jax.random.randint(ktg, (B, LT), 1, VOCAB, jnp.int32)
    pos_l = jnp.arange(L)[None, :]
    pos_t = jnp.arange(LT)[None, :]
    x_l = jnp.where(pos_l < jnp.array([[5], [8]]), x_l, 0)        # lengths 5, 8
    x_r = jnp.where(pos_l < jnp.array([[7], [4]]), x_r, 0)        # lengths 7, 4
    target = jnp.where(pos_t < jnp.array([[2], [3]]), target, 0)  # lengths 2, 3

    fwd = jax.jit(tc_lstm_forward)
    out = fwd(params, x_l, x_r, target)
    jax.block_until_ready(out)

    ref = tc_lstm_reference(params, x_l, x_r, target)
    # bf16 gx + bf16 recurrent-matmul operands (f32 accumulate) vs HIGHEST-precision ref.
    np.testing.assert_allclose(np.asarray(out), np.asarray(ref), rtol=2e-2, atol=2e-2)

    print("KERNEL_OK")
</pallas_src>

<mosaic_0001>
module attributes {stable_mosaic.version = 11 : i64} {
  func.func @_fused_tclstm_kernel(%arg0: i32, %arg1: memref<2x16x128xbf16, #tpu.memory_space<vmem>>, %arg2: memref<2x2x1xi32, #tpu.memory_space<vmem>>, %arg3: memref<2x32x128xbf16, #tpu.memory_space<vmem>>, %arg4: memref<64x128xf32, #tpu.memory_space<vmem>>, %arg5: memref<1x128xf32, #tpu.memory_space<vmem>>, %arg6: memref<2x128xf32, #tpu.memory_space<vmem>>) attributes {dimension_semantics = [#tpu.dimension_semantics<arbitrary>], iteration_bounds = array<i64: 1>, scalar_prefetch = 0 : i64, scratch_operands = 0 : i64, tpu.core_type = #tpu.core_type<tc>, window_params = [{pipeline_mode = #tpu.pipeline_mode<synchronous>, transform_indices = @transform_0, window_bounds = array<i64: 2, 16, 128>}, {pipeline_mode = #tpu.pipeline_mode<synchronous>, transform_indices = @transform_1, window_bounds = array<i64: 2, 2, 1>}, {pipeline_mode = #tpu.pipeline_mode<synchronous>, transform_indices = @transform_2, window_bounds = array<i64: 2, 32, 128>}, {pipeline_mode = #tpu.pipeline_mode<synchronous>, transform_indices = @transform_3, window_bounds = array<i64: 64, 128>}, {pipeline_mode = #tpu.pipeline_mode<synchronous>, transform_indices = @transform_4, window_bounds = array<i64: 1, 128>}, {pipeline_mode = #tpu.pipeline_mode<synchronous>, transform_indices = @transform_5, window_bounds = array<i64: 2, 128>}]} {
    %c0 = arith.constant 0 : index
    %c0_0 = arith.constant 0 : index
    %c0_1 = arith.constant 0 : index
    %0 = vector.load %arg1[%c0, %c0_0, %c0_1] : memref<2x16x128xbf16, #tpu.memory_space<vmem>>, vector<1x16x128xbf16>
    %1 = vector.shape_cast %0 : vector<1x16x128xbf16> to vector<16x128xbf16>
    %2 = arith.extf %1 : vector<16x128xbf16> to vector<16x128xf32>
    %c1 = arith.constant 1 : index
    %c0_2 = arith.constant 0 : index
    %c0_3 = arith.constant 0 : index
    %3 = vector.load %arg1[%c1, %c0_2, %c0_3] : memref<2x16x128xbf16, #tpu.memory_space<vmem>>, vector<1x16x128xbf16>
    %4 = vector.shape_cast %3 : vector<1x16x128xbf16> to vector<16x128xbf16>
    %5 = arith.extf %4 : vector<16x128xbf16> to vector<16x128xf32>
    %c0_4 = arith.constant 0 : index
    %c0_5 = arith.constant 0 : index
    %c0_6 = arith.constant 0 : index
    %6 = vector.load %arg3[%c0_4, %c0_5, %c0_6] : memref<2x32x128xbf16, #tpu.memory_space<vmem>>, vector<1x32x128xbf16>
    %7 = vector.shape_cast %6 : vector<1x32x128xbf16> to vector<32x128xbf16>
    %c1_7 = arith.constant 1 : index
    %c0_8 = arith.constant 0 : index
    %c0_9 = arith.constant 0 : index
    %8 = vector.load %arg3[%c1_7, %c0_8, %c0_9] : memref<2x32x128xbf16, #tpu.memory_space<vmem>>, vector<1x32x128xbf16>
    %9 = vector.shape_cast %8 : vector<1x32x128xbf16> to vector<32x128xbf16>
    %c0_10 = arith.constant 0 : index
    %c0_11 = arith.constant 0 : index
    %c0_12 = arith.constant 0 : index
    %10 = vector.load %arg2[%c0_10, %c0_11, %c0_12] : memref<2x2x1xi32, #tpu.memory_space<vmem>>, vector<1x2x1xi32>
    %11 = vector.shape_cast %10 : vector<1x2x1xi32> to vector<2x1xi32>
    %12 = vector.shape_cast %11 : vector<2x1xi32> to vector<2x1xi32>
    %13 = vector.broadcast %12 : vector<2x1xi32> to vector<2x32xi32>
    %c1_13 = arith.constant 1 : index
    %c0_14 = arith.constant 0 : index
    %c0_15 = arith.constant 0 : index
    %14 = vector.load %arg2[%c1_13, %c0_14, %c0_15] : memref<2x2x1xi32, #tpu.memory_space<vmem>>, vector<1x2x1xi32>
    %15 = vector.shape_cast %14 : vector<1x2x1xi32> to vector<2x1xi32>
    %16 = vector.shape_cast %15 : vector<2x1xi32> to vector<2x1xi32>
    %17 = vector.broadcast %16 : vector<2x1xi32> to vector<2x32xi32>
    %cst = arith.constant 0.000000e+00 : f32
    %18 = vector.broadcast %cst : f32 to vector<2x32xf32>
    %cst_16 = arith.constant 0.000000e+00 : f32
    %19 = vector.broadcast %cst_16 : f32 to vector<2x32xf32>
    %cst_17 = arith.constant 0.000000e+00 : f32
    %20 = vector.broadcast %cst_17 : f32 to vector<2x32xf32>
    %cst_18 = arith.constant 0.000000e+00 : f32
    %21 = vector.broadcast %cst_18 : f32 to vector<2x32xf32>
    %22 = vector.extract_strided_slice %2 {offsets = [0, 0], sizes = [2, 128], strides = [1, 1]} : vector<16x128xf32> to vector<2x128xf32>
    %23 = arith.truncf %18 : vector<2x32xf32> to vector<2x32xbf16>
    %cst_19 = arith.constant dense<0.000000e+00> : vector<2x128xf32>
    %24 = tpu.matmul %23, %7, %cst_19 {dimension_numbers = #tpu.dot_dimension_numbers<[1], [0], [0], [1], [0, 0, 1, 1], [], []>} : vector<2x32xbf16>, vector<32x128xbf16>, vector<2x128xf32> -> vector<2x128xf32>
    %25 = arith.addf %22, %24 : vector<2x128xf32>
    %26 = vector.extract_strided_slice %25 {offsets = [0, 0], sizes = [2, 96], strides = [1, 1]} : vector<2x128xf32> to vector<2x96xf32>
    %27 = arith.negf %26 : vector<2x96xf32>
    %28 = math.exp %27 : vector<2x96xf32>
    %cst_20 = arith.constant 1.000000e+00 : f32
    %29 = vector.broadcast %cst_20 : f32 to vector<2x96xf32>
    %30 = arith.addf %29, %28 : vector<2x96xf32>
    %31 = arith.divf %29, %30 : vector<2x96xf32>
    %32 = vector.extract_strided_slice %25 {offsets = [0, 96], sizes = [2, 32], strides = [1, 1]} : vector<2x128xf32> to vector<2x32xf32>
    %33 = math.tanh %32 : vector<2x32xf32>
    %34 = vector.extract_strided_slice %31 {offsets = [0, 0], sizes = [2, 32], strides = [1, 1]} : vector<2x96xf32> to vector<2x32xf32>
    %35 = vector.extract_strided_slice %31 {offsets = [0, 32], sizes = [2, 32], strides = [1, 1]} : vector<2x96xf32> to vector<2x32xf32>
    %36 = vector.extract_strided_slice %31 {offsets = [0, 64], sizes = [2, 32], strides = [1, 1]} : vector<2x96xf32> to vector<2x32xf32>
    %37 = arith.mulf %35, %19 : vector<2x32xf32>
    %38 = arith.mulf %34, %33 : vector<2x32xf32>
    %39 = arith.addf %37, %38 : vector<2x32xf32>
    %40 = math.tanh %39 : vector<2x32xf32>
    %41 = arith.mulf %36, %40 : vector<2x32xf32>
    %c0_i32 = arith.constant 0 : i32
    %42 = vector.broadcast %c0_i32 : i32 to vector<2x32xi32>
    %43 = arith.cmpi sgt, %13, %42 : vector<2x32xi32>
    %44 = arith.select %43, %41, %18 : vector<2x32xi1>, vector<2x32xf32>
    %45 = arith.select %43, %39, %19 : vector<2x32xi1>, vector<2x32xf32>
    %46 = vector.extract_strided_slice %5 {offsets = [0, 0], sizes = [2, 128], strides = [1, 1]} : vector<16x128xf32> to vector<2x128xf32>
    %47 = arith.truncf %20 : vector<2x32xf32> to vector<2x32xbf16>
    %cst_21 = arith.constant dense<0.000000e+00> : vector<2x128xf32>
    %48 = tpu.matmul %47, %9, %cst_21 {dimension_numbers = #tpu.dot_dimension_numbers<[1], [0], [0], [1], [0, 0, 1, 1], [], []>} : vector<2x32xbf16>, vector<32x128xbf16>, vector<2x128xf32> -> vector<2x128xf32>
    %49 = arith.addf %46, %48 : vector<2x128xf32>
    %50 = vector.extract_strided_slice %49 {offsets = [0, 0], sizes = [2, 96], strides = [1, 1]} : vector<2x128xf32> to vector<2x96xf32>
    %51 = arith.negf %50 : vector<2x96xf32>
    %52 = math.exp %51 : vector<2x96xf32>
    %cst_22 = arith.constant 1.000000e+00 : f32
    %53 = vector.broadcast %cst_22 : f32 to vector<2x96xf32>
    %54 = arith.addf %53, %52 : vector<2x96xf32>
    %55 = arith.divf %53, %54 : vector<2x96xf32>
    %56 = vector.extract_strided_slice %49 {offsets = [0, 96], sizes = [2, 32], strides = [1, 1]} : vector<2x128xf32> to vector<2x32xf32>
    %57 = math.tanh %56 : vector<2x32xf32>
    %58 = vector.extract_strided_slice %55 {offsets = [0, 0], sizes = [2, 32], strides = [1, 1]} : vector<2x96xf32> to vector<2x32xf32>
    %59 = vector.extract_strided_slice %55 {offsets = [0, 32], sizes = [2, 32], strides = [1, 1]} : vector<2x96xf32> to vector<2x32xf32>
    %60 = vector.extract_strided_slice %55 {offsets = [0, 64], sizes = [2, 32], strides = [1, 1]} : vector<2x96xf32> to vector<2x32xf32>
    %61 = arith.mulf %59, %21 : vector<2x32xf32>
    %62 = arith.mulf %58, %57 : vector<2x32xf32>
    %63 = arith.addf %61, %62 : vector<2x32xf32>
    %64 = math.tanh %63 : vector<2x32xf32>
    %65 = arith.mulf %60, %64 : vector<2x32xf32>
    %c0_i32_23 = arith.constant 0 : i32
    %66 = vector.broadcast %c0_i32_23 : i32 to vector<2x32xi32>
    %67 = arith.cmpi sgt, %17, %66 : vector<2x32xi32>
    %68 = arith.select %67, %65, %20 : vector<2x32xi1>, vector<2x32xf32>
    %69 = arith.select %67, %63, %21 : vector<2x32xi1>, vector<2x32xf32>
    %70 = vector.extract_strided_slice %2 {offsets = [2, 0], sizes = [2, 128], strides = [1, 1]} : vector<16x128xf32> to vector<2x128xf32>
    %71 = arith.truncf %44 : vector<2x32xf32> to vector<2x32xbf16>
    %cst_24 = arith.constant dense<0.000000e+00> : vector<2x128xf32>
    %72 = tpu.matmul %71, %7, %cst_24 {dimension_numbers = #tpu.dot_dimension_numbers<[1], [0], [0], [1], [0, 0, 1, 1], [], []>} : vector<2x32xbf16>, vector<32x128xbf16>, vector<2x128xf32> -> vector<2x128xf32>
    %73 = arith.addf %70, %72 : vector<2x128xf32>
    %74 = vector.extract_strided_slice %73 {offsets = [0, 0], sizes = [2, 96], strides = [1, 1]} : vector<2x128xf32> to vector<2x96xf32>
    %75 = arith.negf %74 : vector<2x96xf32>
    %76 = math.exp %75 : vector<2x96xf32>
    %cst_25 = arith.constant 1.000000e+00 : f32
    %77 = vector.broadcast %cst_25 : f32 to vector<2x96xf32>
    %78 = arith.addf %77, %76 : vector<2x96xf32>
    %79 = arith.divf %77, %78 : vector<2x96xf32>
    %80 = vector.extract_strided_slice %73 {offsets = [0, 96], sizes = [2, 32], strides = [1, 1]} : vector<2x128xf32> to vector<2x32xf32>
    %81 = math.tanh %80 : vector<2x32xf32>
    %82 = vector.extract_strided_slice %79 {offsets = [0, 0], sizes = [2, 32], strides = [1, 1]} : vector<2x96xf32> to vector<2x32xf32>
    %83 = vector.extract_strided_slice %79 {offsets = [0, 32], sizes = [2, 32], strides = [1, 1]} : vector<2x96xf32> to vector<2x32xf32>
    %84 = vector.extract_strided_slice %79 {offsets = [0, 64], sizes = [2, 32], strides = [1, 1]} : vector<2x96xf32> to vector<2x32xf32>
    %85 = arith.mulf %83, %45 : vector<2x32xf32>
    %86 = arith.mulf %82, %81 : vector<2x32xf32>
    %87 = arith.addf %85, %86 : vector<2x32xf32>
    %88 = math.tanh %87 : vector<2x32xf32>
    %89 = arith.mulf %84, %88 : vector<2x32xf32>
    %c1_i32 = arith.constant 1 : i32
    %90 = vector.broadcast %c1_i32 : i32 to vector<2x32xi32>
    %91 = arith.cmpi sgt, %13, %90 : vector<2x32xi32>
    %92 = arith.select %91, %89, %44 : vector<2x32xi1>, vector<2x32xf32>
    %93 = arith.select %91, %87, %45 : vector<2x32xi1>, vector<2x32xf32>
    %94 = vector.extract_strided_slice %5 {offsets = [2, 0], sizes = [2, 128], strides = [1, 1]} : vector<16x128xf32> to vector<2x128xf32>
    %95 = arith.truncf %68 : vector<2x32xf32> to vector<2x32xbf16>
    %cst_26 = arith.constant dense<0.000000e+00> : vector<2x128xf32>
    %96 = tpu.matmul %95, %9, %cst_26 {dimension_numbers = #tpu.dot_dimension_numbers<[1], [0], [0], [1], [0, 0, 1, 1], [], []>} : vector<2x32xbf16>, vector<32x128xbf16>, vector<2x128xf32> -> vector<2x128xf32>
    %97 = arith.addf %94, %96 : vector<2x128xf32>
    %98 = vector.extract_strided_slice %97 {offsets = [0, 0], sizes = [2, 96], strides = [1, 1]} : vector<2x128xf32> to vector<2x96xf32>
    %99 = arith.negf %98 : vector<2x96xf32>
    %100 = math.exp %99 : vector<2x96xf32>
    %cst_27 = arith.constant 1.000000e+00 : f32
    %101 = vector.broadcast %cst_27 : f32 to vector<2x96xf32>
    %102 = arith.addf %101, %100 : vector<2x96xf32>
    %103 = arith.divf %101, %102 : vector<2x96xf32>
    %104 = vector.extract_strided_slice %97 {offsets = [0, 96], sizes = [2, 32], strides = [1, 1]} : vector<2x128xf32> to vector<2x32xf32>
    %105 = math.tanh %104 : vector<2x32xf32>
    %106 = vector.extract_strided_slice %103 {offsets = [0, 0], sizes = [2, 32], strides = [1, 1]} : vector<2x96xf32> to vector<2x32xf32>
    %107 = vector.extract_strided_slice %103 {offsets = [0, 32], sizes = [2, 32], strides = [1, 1]} : vector<2x96xf32> to vector<2x32xf32>
    %108 = vector.extract_strided_slice %103 {offsets = [0, 64], sizes = [2, 32], strides = [1, 1]} : vector<2x96xf32> to vector<2x32xf32>
    %109 = arith.mulf %107, %69 : vector<2x32xf32>
    %110 = arith.mulf %106, %105 : vector<2x32xf32>
    %111 = arith.addf %109, %110 : vector<2x32xf32>
    %112 = math.tanh %111 : vector<2x32xf32>
    %113 = arith.mulf %108, %112 : vector<2x32xf32>
    %c1_i32_28 = arith.constant 1 : i32
    %114 = vector.broadcast %c1_i32_28 : i32 to vector<2x32xi32>
    %115 = arith.cmpi sgt, %17, %114 : vector<2x32xi32>
    %116 = arith.select %115, %113, %68 : vector<2x32xi1>, vector<2x32xf32>
    %117 = arith.select %115, %111, %69 : vector<2x32xi1>, vector<2x32xf32>
    %118 = vector.extract_strided_slice %2 {offsets = [4, 0], sizes = [2, 128], strides = [1, 1]} : vector<16x128xf32> to vector<2x128xf32>
    %119 = arith.truncf %92 : vector<2x32xf32> to vector<2x32xbf16>
    %cst_29 = arith.constant dense<0.000000e+00> : vector<2x128xf32>
    %120 = tpu.matmul %119, %7, %cst_29 {dimension_numbers = #tpu.dot_dimension_numbers<[1], [0], [0], [1], [0, 0, 1, 1], [], []>} : vector<2x32xbf16>, vector<32x128xbf16>, vector<2x128xf32> -> vector<2x128xf32>
    %121 = arith.addf %118, %120 : vector<2x128xf32>
    %122 = vector.extract_strided_slice %121 {offsets = [0, 0], sizes = [2, 96], strides = [1, 1]} : vector<2x128xf32> to vector<2x96xf32>
    %123 = arith.negf %122 : vector<2x96xf32>
    %124 = math.exp %123 : vector<2x96xf32>
    %cst_30 = arith.constant 1.000000e+00 : f32
    %125 = vector.broadcast %cst_30 : f32 to vector<2x96xf32>
    %126 = arith.addf %125, %124 : vector<2x96xf32>
    %127 = arith.divf %125, %126 : vector<2x96xf32>
    %128 = vector.extract_strided_slice %121 {offsets = [0, 96], sizes = [2, 32], strides = [1, 1]} : vector<2x128xf32> to vector<2x32xf32>
    %129 = math.tanh %128 : vector<2x32xf32>
    %130 = vector.extract_strided_slice %127 {offsets = [0, 0], sizes = [2, 32], strides = [1, 1]} : vector<2x96xf32> to vector<2x32xf32>
    %131 = vector.extract_strided_slice %127 {offsets = [0, 32], sizes = [2, 32], strides = [1, 1]} : vector<2x96xf32> to vector<2x32xf32>
    %132 = vector.extract_strided_slice %127 {offsets = [0, 64], sizes = [2, 32], strides = [1, 1]} : vector<2x96xf32> to vector<2x32xf32>
    %133 = arith.mulf %131, %93 : vector<2x32xf32>
    %134 = arith.mulf %130, %129 : vector<2x32xf32>
    %135 = arith.addf %133, %134 : vector<2x32xf32>
    %136 = math.tanh %135 : vector<2x32xf32>
    %137 = arith.mulf %132, %136 : vector<2x32xf32>
    %c2_i32 = arith.constant 2 : i32
    %138 = vector.broadcast %c2_i32 : i32 to vector<2x32xi32>
    %139 = arith.cmpi sgt, %13, %138 : vector<2x32xi32>
    %140 = arith.select %139, %137, %92 : vector<2x32xi1>, vector<2x32xf32>
    %141 = arith.select %139, %135, %93 : vector<2x32xi1>, vector<2x32xf32>
    %142 = vector.extract_strided_slice %5 {offsets = [4, 0], sizes = [2, 128], strides = [1, 1]} : vector<16x128xf32> to vector<2x128xf32>
    %143 = arith.truncf %116 : vector<2x32xf32> to vector<2x32xbf16>
    %cst_31 = arith.constant dense<0.000000e+00> : vector<2x128xf32>
    %144 = tpu.matmul %143, %9, %cst_31 {dimension_numbers = #tpu.dot_dimension_numbers<[1], [0], [0], [1], [0, 0, 1, 1], [], []>} : vector<2x32xbf16>, vector<32x128xbf16>, vector<2x128xf32> -> vector<2x128xf32>
    %145 = arith.addf %142, %144 : vector<2x128xf32>
    %146 = vector.extract_strided_slice %145 {offsets = [0, 0], sizes = [2, 96], strides = [1, 1]} : vector<2x128xf32> to vector<2x96xf32>
    %147 = arith.negf %146 : vector<2x96xf32>
    %148 = math.exp %147 : vector<2x96xf32>
    %cst_32 = arith.constant 1.000000e+00 : f32
    %149 = vector.broadcast %cst_32 : f32 to vector<2x96xf32>
    %150 = arith.addf %149, %148 : vector<2x96xf32>
    %151 = arith.divf %149, %150 : vector<2x96xf32>
    %152 = vector.extract_strided_slice %145 {offsets = [0, 96], sizes = [2, 32], strides = [1, 1]} : vector<2x128xf32> to vector<2x32xf32>
    %153 = math.tanh %152 : vector<2x32xf32>
    %154 = vector.extract_strided_slice %151 {offsets = [0, 0], sizes = [2, 32], strides = [1, 1]} : vector<2x96xf32> to vector<2x32xf32>
    %155 = vector.extract_strided_slice %151 {offsets = [0, 32], sizes = [2, 32], strides = [1, 1]} : vector<2x96xf32> to vector<2x32xf32>
    %156 = vector.extract_strided_slice %151 {offsets = [0, 64], sizes = [2, 32], strides = [1, 1]} : vector<2x96xf32> to vector<2x32xf32>
    %157 = arith.mulf %155, %117 : vector<2x32xf32>
    %158 = arith.mulf %154, %153 : vector<2x32xf32>
    %159 = arith.addf %157, %158 : vector<2x32xf32>
    %160 = math.tanh %159 : vector<2x32xf32>
    %161 = arith.mulf %156, %160 : vector<2x32xf32>
    %c2_i32_33 = arith.constant 2 : i32
    %162 = vector.broadcast %c2_i32_33 : i32 to vector<2x32xi32>
    %163 = arith.cmpi sgt, %17, %162 : vector<2x32xi32>
    %164 = arith.select %163, %161, %116 : vector<2x32xi1>, vector<2x32xf32>
    %165 = arith.select %163, %159, %117 : vector<2x32xi1>, vector<2x32xf32>
    %166 = vector.extract_strided_slice %2 {offsets = [6, 0], sizes = [2, 128], strides = [1, 1]} : vector<16x128xf32> to vector<2x128xf32>
    %167 = arith.truncf %140 : vector<2x32xf32> to vector<2x32xbf16>
    %cst_34 = arith.constant dense<0.000000e+00> : vector<2x128xf32>
    %168 = tpu.matmul %167, %7, %cst_34 {dimension_numbers = #tpu.dot_dimension_numbers<[1], [0], [0], [1], [0, 0, 1, 1], [], []>} : vector<2x32xbf16>, vector<32x128xbf16>, vector<2x128xf32> -> vector<2x128xf32>
    %169 = arith.addf %166, %168 : vector<2x128xf32>
    %170 = vector.extract_strided_slice %169 {offsets = [0, 0], sizes = [2, 96], strides = [1, 1]} : vector<2x128xf32> to vector<2x96xf32>
    %171 = arith.negf %170 : vector<2x96xf32>
    %172 = math.exp %171 : vector<2x96xf32>
    %cst_35 = arith.constant 1.000000e+00 : f32
    %173 = vector.broadcast %cst_35 : f32 to vector<2x96xf32>
    %174 = arith.addf %173, %172 : vector<2x96xf32>
    %175 = arith.divf %173, %174 : vector<2x96xf32>
    %176 = vector.extract_strided_slice %169 {offsets = [0, 96], sizes = [2, 32], strides = [1, 1]} : vector<2x128xf32> to vector<2x32xf32>
    %177 = math.tanh %176 : vector<2x32xf32>
    %178 = vector.extract_strided_slice %175 {offsets = [0, 0], sizes = [2, 32], strides = [1, 1]} : vector<2x96xf32> to vector<2x32xf32>
    %179 = vector.extract_strided_slice %175 {offsets = [0, 32], sizes = [2, 32], strides = [1, 1]} : vector<2x96xf32> to vector<2x32xf32>
    %180 = vector.extract_strided_slice %175 {offsets = [0, 64], sizes = [2, 32], strides = [1, 1]} : vector<2x96xf32> to vector<2x32xf32>
    %181 = arith.mulf %179, %141 : vector<2x32xf32>
    %182 = arith.mulf %178, %177 : vector<2x32xf32>
    %183 = arith.addf %181, %182 : vector<2x32xf32>
    %184 = math.tanh %183 : vector<2x32xf32>
    %185 = arith.mulf %180, %184 : vector<2x32xf32>
    %c3_i32 = arith.constant 3 : i32
    %186 = vector.broadcast %c3_i32 : i32 to vector<2x32xi32>
    %187 = arith.cmpi sgt, %13, %186 : vector<2x32xi32>
    %188 = arith.select %187, %185, %140 : vector<2x32xi1>, vector<2x32xf32>
    %189 = arith.select %187, %183, %141 : vector<2x32xi1>, vector<2x32xf32>
    %190 = vector.extract_strided_slice %5 {offsets = [6, 0], sizes = [2, 128], strides = [1, 1]} : vector<16x128xf32> to vector<2x128xf32>
    %191 = arith.truncf %164 : vector<2x32xf32> to vector<2x32xbf16>
    %cst_36 = arith.constant dense<0.000000e+00> : vector<2x128xf32>
    %192 = tpu.matmul %191, %9, %cst_36 {dimension_numbers = #tpu.dot_dimension_numbers<[1], [0], [0], [1], [0, 0, 1, 1], [], []>} : vector<2x32xbf16>, vector<32x128xbf16>, vector<2x128xf32> -> vector<2x128xf32>
    %193 = arith.addf %190, %192 : vector<2x128xf32>
    %194 = vector.extract_strided_slice %193 {offsets = [0, 0], sizes = [2, 96], strides = [1, 1]} : vector<2x128xf32> to vector<2x96xf32>
    %195 = arith.negf %194 : vector<2x96xf32>
    %196 = math.exp %195 : vector<2x96xf32>
    %cst_37 = arith.constant 1.000000e+00 : f32
    %197 = vector.broadcast %cst_37 : f32 to vector<2x96xf32>
    %198 = arith.addf %197, %196 : vector<2x96xf32>
    %199 = arith.divf %197, %198 : vector<2x96xf32>
    %200 = vector.extract_strided_slice %193 {offsets = [0, 96], sizes = [2, 32], strides = [1, 1]} : vector<2x128xf32> to vector<2x32xf32>
    %201 = math.tanh %200 : vector<2x32xf32>
    %202 = vector.extract_strided_slice %199 {offsets = [0, 0], sizes = [2, 32], strides = [1, 1]} : vector<2x96xf32> to vector<2x32xf32>
    %203 = vector.extract_strided_slice %199 {offsets = [0, 32], sizes = [2, 32], strides = [1, 1]} : vector<2x96xf32> to vector<2x32xf32>
    %204 = vector.extract_strided_slice %199 {offsets = [0, 64], sizes = [2, 32], strides = [1, 1]} : vector<2x96xf32> to vector<2x32xf32>
    %205 = arith.mulf %203, %165 : vector<2x32xf32>
    %206 = arith.mulf %202, %201 : vector<2x32xf32>
    %207 = arith.addf %205, %206 : vector<2x32xf32>
    %208 = math.tanh %207 : vector<2x32xf32>
    %209 = arith.mulf %204, %208 : vector<2x32xf32>
    %c3_i32_38 = arith.constant 3 : i32
    %210 = vector.broadcast %c3_i32_38 : i32 to vector<2x32xi32>
    %211 = arith.cmpi sgt, %17, %210 : vector<2x32xi32>
    %212 = arith.select %211, %209, %164 : vector<2x32xi1>, vector<2x32xf32>
    %213 = arith.select %211, %207, %165 : vector<2x32xi1>, vector<2x32xf32>
    %214 = vector.extract_strided_slice %2 {offsets = [8, 0], sizes = [2, 128], strides = [1, 1]} : vector<16x128xf32> to vector<2x128xf32>
    %215 = arith.truncf %188 : vector<2x32xf32> to vector<2x32xbf16>
    %cst_39 = arith.constant dense<0.000000e+00> : vector<2x128xf32>
    %216 = tpu.matmul %215, %7, %cst_39 {dimension_numbers = #tpu.dot_dimension_numbers<[1], [0], [0], [1], [0, 0, 1, 1], [], []>} : vector<2x32xbf16>, vector<32x128xbf16>, vector<2x128xf32> -> vector<2x128xf32>
    %217 = arith.addf %214, %216 : vector<2x128xf32>
    %218 = vector.extract_strided_slice %217 {offsets = [0, 0], sizes = [2, 96], strides = [1, 1]} : vector<2x128xf32> to vector<2x96xf32>
    %219 = arith.negf %218 : vector<2x96xf32>
    %220 = math.exp %219 : vector<2x96xf32>
    %cst_40 = arith.constant 1.000000e+00 : f32
    %221 = vector.broadcast %cst_40 : f32 to vector<2x96xf32>
    %222 = arith.addf %221, %220 : vector<2x96xf32>
    %223 = arith.divf %221, %222 : vector<2x96xf32>
    %224 = vector.extract_strided_slice %217 {offsets = [0, 96], sizes = [2, 32], strides = [1, 1]} : vector<2x128xf32> to vector<2x32xf32>
    %225 = math.tanh %224 : vector<2x32xf32>
    %226 = vector.extract_strided_slice %223 {offsets = [0, 0], sizes = [2, 32], strides = [1, 1]} : vector<2x96xf32> to vector<2x32xf32>
    %227 = vector.extract_strided_slice %223 {offsets = [0, 32], sizes = [2, 32], strides = [1, 1]} : vector<2x96xf32> to vector<2x32xf32>
    %228 = vector.extract_strided_slice %223 {offsets = [0, 64], sizes = [2, 32], strides = [1, 1]} : vector<2x96xf32> to vector<2x32xf32>
    %229 = arith.mulf %227, %189 : vector<2x32xf32>
    %230 = arith.mulf %226, %225 : vector<2x32xf32>
    %231 = arith.addf %229, %230 : vector<2x32xf32>
    %232 = math.tanh %231 : vector<2x32xf32>
    %233 = arith.mulf %228, %232 : vector<2x32xf32>
    %c4_i32 = arith.constant 4 : i32
    %234 = vector.broadcast %c4_i32 : i32 to vector<2x32xi32>
    %235 = arith.cmpi sgt, %13, %234 : vector<2x32xi32>
    %236 = arith.select %235, %233, %188 : vector<2x32xi1>, vector<2x32xf32>
    %237 = arith.select %235, %231, %189 : vector<2x32xi1>, vector<2x32xf32>
    %238 = vector.extract_strided_slice %5 {offsets = [8, 0], sizes = [2, 128], strides = [1, 1]} : vector<16x128xf32> to vector<2x128xf32>
    %239 = arith.truncf %212 : vector<2x32xf32> to vector<2x32xbf16>
    %cst_41 = arith.constant dense<0.000000e+00> : vector<2x128xf32>
    %240 = tpu.matmul %239, %9, %cst_41 {dimension_numbers = #tpu.dot_dimension_numbers<[1], [0], [0], [1], [0, 0, 1, 1], [], []>} : vector<2x32xbf16>, vector<32x128xbf16>, vector<2x128xf32> -> vector<2x128xf32>
    %241 = arith.addf %238, %240 : vector<2x128xf32>
    %242 = vector.extract_strided_slice %241 {offsets = [0, 0], sizes = [2, 96], strides = [1, 1]} : vector<2x128xf32> to vector<2x96xf32>
    %243 = arith.negf %242 : vector<2x96xf32>
    %244 = math.exp %243 : vector<2x96xf32>
    %cst_42 = arith.constant 1.000000e+00 : f32
    %245 = vector.broadcast %cst_42 : f32 to vector<2x96xf32>
    %246 = arith.addf %245, %244 : vector<2x96xf32>
    %247 = arith.divf %245, %246 : vector<2x96xf32>
    %248 = vector.extract_strided_slice %241 {offsets = [0, 96], sizes = [2, 32], strides = [1, 1]} : vector<2x128xf32> to vector<2x32xf32>
    %249 = math.tanh %248 : vector<2x32xf32>
    %250 = vector.extract_strided_slice %247 {offsets = [0, 0], sizes = [2, 32], strides = [1, 1]} : vector<2x96xf32> to vector<2x32xf32>
    %251 = vector.extract_strided_slice %247 {offsets = [0, 32], sizes = [2, 32], strides = [1, 1]} : vector<2x96xf32> to vector<2x32xf32>
    %252 = vector.extract_strided_slice %247 {offsets = [0, 64], sizes = [2, 32], strides = [1, 1]} : vector<2x96xf32> to vector<2x32xf32>
    %253 = arith.mulf %251, %213 : vector<2x32xf32>
    %254 = arith.mulf %250, %249 : vector<2x32xf32>
    %255 = arith.addf %253, %254 : vector<2x32xf32>
    %256 = math.tanh %255 : vector<2x32xf32>
    %257 = arith.mulf %252, %256 : vector<2x32xf32>
    %c4_i32_43 = arith.constant 4 : i32
    %258 = vector.broadcast %c4_i32_43 : i32 to vector<2x32xi32>
    %259 = arith.cmpi sgt, %17, %258 : vector<2x32xi32>
    %260 = arith.select %259, %257, %212 : vector<2x32xi1>, vector<2x32xf32>
    %261 = arith.select %259, %255, %213 : vector<2x32xi1>, vector<2x32xf32>
    %262 = vector.extract_strided_slice %2 {offsets = [10, 0], sizes = [2, 128], strides = [1, 1]} : vector<16x128xf32> to vector<2x128xf32>
    %263 = arith.truncf %236 : vector<2x32xf32> to vector<2x32xbf16>
    %cst_44 = arith.constant dense<0.000000e+00> : vector<2x128xf32>
    %264 = tpu.matmul %263, %7, %cst_44 {dimension_numbers = #tpu.dot_dimension_numbers<[1], [0], [0], [1], [0, 0, 1, 1], [], []>} : vector<2x32xbf16>, vector<32x128xbf16>, vector<2x128xf32> -> vector<2x128xf32>
    %265 = arith.addf %262, %264 : vector<2x128xf32>
    %266 = vector.extract_strided_slice %265 {offsets = [0, 0], sizes = [2, 96], strides = [1, 1]} : vector<2x128xf32> to vector<2x96xf32>
    %267 = arith.negf %266 : vector<2x96xf32>
    %268 = math.exp %267 : vector<2x96xf32>
    %cst_45 = arith.constant 1.000000e+00 : f32
    %269 = vector.broadcast %cst_45 : f32 to vector<2x96xf32>
    %270 = arith.addf %269, %268 : vector<2x96xf32>
    %271 = arith.divf %269, %270 : vector<2x96xf32>
    %272 = vector.extract_strided_slice %265 {offsets = [0, 96], sizes = [2, 32], strides = [1, 1]} : vector<2x128xf32> to vector<2x32xf32>
    %273 = math.tanh %272 : vector<2x32xf32>
    %274 = vector.extract_strided_slice %271 {offsets = [0, 0], sizes = [2, 32], strides = [1, 1]} : vector<2x96xf32> to vector<2x32xf32>
    %275 = vector.extract_strided_slice %271 {offsets = [0, 32], sizes = [2, 32], strides = [1, 1]} : vector<2x96xf32> to vector<2x32xf32>
    %276 = vector.extract_strided_slice %271 {offsets = [0, 64], sizes = [2, 32], strides = [1, 1]} : vector<2x96xf32> to vector<2x32xf32>
    %277 = arith.mulf %275, %237 : vector<2x32xf32>
    %278 = arith.mulf %274, %273 : vector<2x32xf32>
    %279 = arith.addf %277, %278 : vector<2x32xf32>
    %280 = math.tanh %279 : vector<2x32xf32>
    %281 = arith.mulf %276, %280 : vector<2x32xf32>
    %c5_i32 = arith.constant 5 : i32
    %282 = vector.broadcast %c5_i32 : i32 to vector<2x32xi32>
    %283 = arith.cmpi sgt, %13, %282 : vector<2x32xi32>
    %284 = arith.select %283, %281, %236 : vector<2x32xi1>, vector<2x32xf32>
    %285 = arith.select %283, %279, %237 : vector<2x32xi1>, vector<2x32xf32>
    %286 = vector.extract_strided_slice %5 {offsets = [10, 0], sizes = [2, 128], strides = [1, 1]} : vector<16x128xf32> to vector<2x128xf32>
    %287 = arith.truncf %260 : vector<2x32xf32> to vector<2x32xbf16>
    %cst_46 = arith.constant dense<0.000000e+00> : vector<2x128xf32>
    %288 = tpu.matmul %287, %9, %cst_46 {dimension_numbers = #tpu.dot_dimension_numbers<[1], [0], [0], [1], [0, 0, 1, 1], [], []>} : vector<2x32xbf16>, vector<32x128xbf16>, vector<2x128xf32> -> vector<2x128xf32>
    %289 = arith.addf %286, %288 : vector<2x128xf32>
    %290 = vector.extract_strided_slice %289 {offsets = [0, 0], sizes = [2, 96], strides = [1, 1]} : vector<2x128xf32> to vector<2x96xf32>
    %291 = arith.negf %290 : vector<2x96xf32>
    %292 = math.exp %291 : vector<2x96xf32>
    %cst_47 = arith.constant 1.000000e+00 : f32
    %293 = vector.broadcast %cst_47 : f32 to vector<2x96xf32>
    %294 = arith.addf %293, %292 : vector<2x96xf32>
    %295 = arith.divf %293, %294 : vector<2x96xf32>
    %296 = vector.extract_strided_slice %289 {offsets = [0, 96], sizes = [2, 32], strides = [1, 1]} : vector<2x128xf32> to vector<2x32xf32>
    %297 = math.tanh %296 : vector<2x32xf32>
    %298 = vector.extract_strided_slice %295 {offsets = [0, 0], sizes = [2, 32], strides = [1, 1]} : vector<2x96xf32> to vector<2x32xf32>
    %299 = vector.extract_strided_slice %295 {offsets = [0, 32], sizes = [2, 32], strides = [1, 1]} : vector<2x96xf32> to vector<2x32xf32>
    %300 = vector.extract_strided_slice %295 {offsets = [0, 64], sizes = [2, 32], strides = [1, 1]} : vector<2x96xf32> to vector<2x32xf32>
    %301 = arith.mulf %299, %261 : vector<2x32xf32>
    %302 = arith.mulf %298, %297 : vector<2x32xf32>
    %303 = arith.addf %301, %302 : vector<2x32xf32>
    %304 = math.tanh %303 : vector<2x32xf32>
    %305 = arith.mulf %300, %304 : vector<2x32xf32>
    %c5_i32_48 = arith.constant 5 : i32
    %306 = vector.broadcast %c5_i32_48 : i32 to vector<2x32xi32>
    %307 = arith.cmpi sgt, %17, %306 : vector<2x32xi32>
    %308 = arith.select %307, %305, %260 : vector<2x32xi1>, vector<2x32xf32>
    %309 = arith.select %307, %303, %261 : vector<2x32xi1>, vector<2x32xf32>
    %310 = vector.extract_strided_slice %2 {offsets = [12, 0], sizes = [2, 128], strides = [1, 1]} : vector<16x128xf32> to vector<2x128xf32>
    %311 = arith.truncf %284 : vector<2x32xf32> to vector<2x32xbf16>
    %cst_49 = arith.constant dense<0.000000e+00> : vector<2x128xf32>
    %312 = tpu.matmul %311, %7, %cst_49 {dimension_numbers = #tpu.dot_dimension_numbers<[1], [0], [0], [1], [0, 0, 1, 1], [], []>} : vector<2x32xbf16>, vector<32x128xbf16>, vector<2x128xf32> -> vector<2x128xf32>
    %313 = arith.addf %310, %312 : vector<2x128xf32>
    %314 = vector.extract_strided_slice %313 {offsets = [0, 0], sizes = [2, 96], strides = [1, 1]} : vector<2x128xf32> to vector<2x96xf32>
    %315 = arith.negf %314 : vector<2x96xf32>
    %316 = math.exp %315 : vector<2x96xf32>
    %cst_50 = arith.constant 1.000000e+00 : f32
    %317 = vector.broadcast %cst_50 : f32 to vector<2x96xf32>
    %318 = arith.addf %317, %316 : vector<2x96xf32>
    %319 = arith.divf %317, %318 : vector<2x96xf32>
    %320 = vector.extract_strided_slice %313 {offsets = [0, 96], sizes = [2, 32], strides = [1, 1]} : vector<2x128xf32> to vector<2x32xf32>
    %321 = math.tanh %320 : vector<2x32xf32>
    %322 = vector.extract_strided_slice %319 {offsets = [0, 0], sizes = [2, 32], strides = [1, 1]} : vector<2x96xf32> to vector<2x32xf32>
    %323 = vector.extract_strided_slice %319 {offsets = [0, 32], sizes = [2, 32], strides = [1, 1]} : vector<2x96xf32> to vector<2x32xf32>
    %324 = vector.extract_strided_slice %319 {offsets = [0, 64], sizes = [2, 32], strides = [1, 1]} : vector<2x96xf32> to vector<2x32xf32>
    %325 = arith.mulf %323, %285 : vector<2x32xf32>
    %326 = arith.mulf %322, %321 : vector<2x32xf32>
    %327 = arith.addf %325, %326 : vector<2x32xf32>
    %328 = math.tanh %327 : vector<2x32xf32>
    %329 = arith.mulf %324, %328 : vector<2x32xf32>
    %c6_i32 = arith.constant 6 : i32
    %330 = vector.broadcast %c6_i32 : i32 to vector<2x32xi32>
    %331 = arith.cmpi sgt, %13, %330 : vector<2x32xi32>
    %332 = arith.select %331, %329, %284 : vector<2x32xi1>, vector<2x32xf32>
    %333 = arith.select %331, %327, %285 : vector<2x32xi1>, vector<2x32xf32>
    %334 = vector.extract_strided_slice %5 {offsets = [12, 0], sizes = [2, 128], strides = [1, 1]} : vector<16x128xf32> to vector<2x128xf32>
    %335 = arith.truncf %308 : vector<2x32xf32> to vector<2x32xbf16>
    %cst_51 = arith.constant dense<0.000000e+00> : vector<2x128xf32>
    %336 = tpu.matmul %335, %9, %cst_51 {dimension_numbers = #tpu.dot_dimension_numbers<[1], [0], [0], [1], [0, 0, 1, 1], [], []>} : vector<2x32xbf16>, vector<32x128xbf16>, vector<2x128xf32> -> vector<2x128xf32>
    %337 = arith.addf %334, %336 : vector<2x128xf32>
    %338 = vector.extract_strided_slice %337 {offsets = [0, 0], sizes = [2, 96], strides = [1, 1]} : vector<2x128xf32> to vector<2x96xf32>
    %339 = arith.negf %338 : vector<2x96xf32>
    %340 = math.exp %339 : vector<2x96xf32>
    %cst_52 = arith.constant 1.000000e+00 : f32
    %341 = vector.broadcast %cst_52 : f32 to vector<2x96xf32>
    %342 = arith.addf %341, %340 : vector<2x96xf32>
    %343 = arith.divf %341, %342 : vector<2x96xf32>
    %344 = vector.extract_strided_slice %337 {offsets = [0, 96], sizes = [2, 32], strides = [1, 1]} : vector<2x128xf32> to vector<2x32xf32>
    %345 = math.tanh %344 : vector<2x32xf32>
    %346 = vector.extract_strided_slice %343 {offsets = [0, 0], sizes = [2, 32], strides = [1, 1]} : vector<2x96xf32> to vector<2x32xf32>
    %347 = vector.extract_strided_slice %343 {offsets = [0, 32], sizes = [2, 32], strides = [1, 1]} : vector<2x96xf32> to vector<2x32xf32>
    %348 = vector.extract_strided_slice %343 {offsets = [0, 64], sizes = [2, 32], strides = [1, 1]} : vector<2x96xf32> to vector<2x32xf32>
    %349 = arith.mulf %347, %309 : vector<2x32xf32>
    %350 = arith.mulf %346, %345 : vector<2x32xf32>
    %351 = arith.addf %349, %350 : vector<2x32xf32>
    %352 = math.tanh %351 : vector<2x32xf32>
    %353 = arith.mulf %348, %352 : vector<2x32xf32>
    %c6_i32_53 = arith.constant 6 : i32
    %354 = vector.broadcast %c6_i32_53 : i32 to vector<2x32xi32>
    %355 = arith.cmpi sgt, %17, %354 : vector<2x32xi32>
    %356 = arith.select %355, %353, %308 : vector<2x32xi1>, vector<2x32xf32>
    %357 = arith.select %355, %351, %309 : vector<2x32xi1>, vector<2x32xf32>
    %358 = vector.extract_strided_slice %2 {offsets = [14, 0], sizes = [2, 128], strides = [1, 1]} : vector<16x128xf32> to vector<2x128xf32>
    %359 = arith.truncf %332 : vector<2x32xf32> to vector<2x32xbf16>
    %cst_54 = arith.constant dense<0.000000e+00> : vector<2x128xf32>
    %360 = tpu.matmul %359, %7, %cst_54 {dimension_numbers = #tpu.dot_dimension_numbers<[1], [0], [0], [1], [0, 0, 1, 1], [], []>} : vector<2x32xbf16>, vector<32x128xbf16>, vector<2x128xf32> -> vector<2x128xf32>
    %361 = arith.addf %358, %360 : vector<2x128xf32>
    %362 = vector.extract_strided_slice %361 {offsets = [0, 0], sizes = [2, 96], strides = [1, 1]} : vector<2x128xf32> to vector<2x96xf32>
    %363 = arith.negf %362 : vector<2x96xf32>
    %364 = math.exp %363 : vector<2x96xf32>
    %cst_55 = arith.constant 1.000000e+00 : f32
    %365 = vector.broadcast %cst_55 : f32 to vector<2x96xf32>
    %366 = arith.addf %365, %364 : vector<2x96xf32>
    %367 = arith.divf %365, %366 : vector<2x96xf32>
    %368 = vector.extract_strided_slice %361 {offsets = [0, 96], sizes = [2, 32], strides = [1, 1]} : vector<2x128xf32> to vector<2x32xf32>
    %369 = math.tanh %368 : vector<2x32xf32>
    %370 = vector.extract_strided_slice %367 {offsets = [0, 0], sizes = [2, 32], strides = [1, 1]} : vector<2x96xf32> to vector<2x32xf32>
    %371 = vector.extract_strided_slice %367 {offsets = [0, 32], sizes = [2, 32], strides = [1, 1]} : vector<2x96xf32> to vector<2x32xf32>
    %372 = vector.extract_strided_slice %367 {offsets = [0, 64], sizes = [2, 32], strides = [1, 1]} : vector<2x96xf32> to vector<2x32xf32>
    %373 = arith.mulf %371, %333 : vector<2x32xf32>
    %374 = arith.mulf %370, %369 : vector<2x32xf32>
    %375 = arith.addf %373, %374 : vector<2x32xf32>
    %376 = math.tanh %375 : vector<2x32xf32>
    %377 = arith.mulf %372, %376 : vector<2x32xf32>
    %c7_i32 = arith.constant 7 : i32
    %378 = vector.broadcast %c7_i32 : i32 to vector<2x32xi32>
    %379 = arith.cmpi sgt, %13, %378 : vector<2x32xi32>
    %380 = arith.select %379, %377, %332 : vector<2x32xi1>, vector<2x32xf32>
    %381 = vector.extract_strided_slice %5 {offsets = [14, 0], sizes = [2, 128], strides = [1, 1]} : vector<16x128xf32> to vector<2x128xf32>
    %382 = arith.truncf %356 : vector<2x32xf32> to vector<2x32xbf16>
    %cst_56 = arith.constant dense<0.000000e+00> : vector<2x128xf32>
    %383 = tpu.matmul %382, %9, %cst_56 {dimension_numbers = #tpu.dot_dimension_numbers<[1], [0], [0], [1], [0, 0, 1, 1], [], []>} : vector<2x32xbf16>, vector<32x128xbf16>, vector<2x128xf32> -> vector<2x128xf32>
    %384 = arith.addf %381, %383 : vector<2x128xf32>
    %385 = vector.extract_strided_slice %384 {offsets = [0, 0], sizes = [2, 96], strides = [1, 1]} : vector<2x128xf32> to vector<2x96xf32>
    %386 = arith.negf %385 : vector<2x96xf32>
    %387 = math.exp %386 : vector<2x96xf32>
    %cst_57 = arith.constant 1.000000e+00 : f32
    %388 = vector.broadcast %cst_57 : f32 to vector<2x96xf32>
    %389 = arith.addf %388, %387 : vector<2x96xf32>
    %390 = arith.divf %388, %389 : vector<2x96xf32>
    %391 = vector.extract_strided_slice %384 {offsets = [0, 96], sizes = [2, 32], strides = [1, 1]} : vector<2x128xf32> to vector<2x32xf32>
    %392 = math.tanh %391 : vector<2x32xf32>
    %393 = vector.extract_strided_slice %390 {offsets = [0, 0], sizes = [2, 32], strides = [1, 1]} : vector<2x96xf32> to vector<2x32xf32>
    %394 = vector.extract_strided_slice %390 {offsets = [0, 32], sizes = [2, 32], strides = [1, 1]} : vector<2x96xf32> to vector<2x32xf32>
    %395 = vector.extract_strided_slice %390 {offsets = [0, 64], sizes = [2, 32], strides = [1, 1]} : vector<2x96xf32> to vector<2x32xf32>
    %396 = arith.mulf %394, %357 : vector<2x32xf32>
    %397 = arith.mulf %393, %392 : vector<2x32xf32>
    %398 = arith.addf %396, %397 : vector<2x32xf32>
    %399 = math.tanh %398 : vector<2x32xf32>
    %400 = arith.mulf %395, %399 : vector<2x32xf32>
    %c7_i32_58 = arith.constant 7 : i32
    %401 = vector.broadcast %c7_i32_58 : i32 to vector<2x32xi32>
    %402 = arith.cmpi sgt, %17, %401 : vector<2x32xi32>
    %403 = arith.select %402, %400, %356 : vector<2x32xi1>, vector<2x32xf32>
    %404 = tpu.concatenate %380, %403 in 1 : vector<2x32xf32>, vector<2x32xf32> -> vector<2x64xf32>
    %c0_59 = arith.constant 0 : index
    %c0_60 = arith.constant 0 : index
    %405 = vector.load %arg4[%c0_59, %c0_60] : memref<64x128xf32, #tpu.memory_space<vmem>>, vector<64x128xf32>
    %cst_61 = arith.constant dense<0.000000e+00> : vector<2x128xf32>
    %406 = tpu.matmul %404, %405, %cst_61 {dimension_numbers = #tpu.dot_dimension_numbers<[1], [0], [0], [1], [0, 0, 1, 1], [], []>} : vector<2x64xf32>, vector<64x128xf32>, vector<2x128xf32> -> vector<2x128xf32>
    %c0_62 = arith.constant 0 : index
    %c0_63 = arith.constant 0 : index
    %407 = vector.load %arg5[%c0_62, %c0_63] : memref<1x128xf32, #tpu.memory_space<vmem>>, vector<1x128xf32>
    %408 = vector.broadcast %407 : vector<1x128xf32> to vector<2x128xf32>
    %409 = arith.addf %406, %408 : vector<2x128xf32>
    %c0_64 = arith.constant 0 : index
    %c0_65 = arith.constant 0 : index
    %410 = vector.load %arg6[%c0_64, %c0_65] : memref<2x128xf32, #tpu.memory_space<vmem>>, vector<2x128xf32>
    tpu.vector_store %arg6[%c0_64, %c0_65], %409 {strides = array<i32>} : memref<2x128xf32, #tpu.memory_space<vmem>>, vector<2x128xf32>,
    return
  }
  func.func @transform_0(%arg0: i32) -> (i32, i32, i32) {
    %c0_i32 = arith.constant 0 : i32
    %c0_i32_0 = arith.constant 0 : i32
    %c0_i32_1 = arith.constant 0 : i32
    %c0_i32_2 = arith.constant 0 : i32
    return %c0_i32, %c0_i32_0, %c0_i32_1 : i32, i32, i32
  }
  func.func @transform_1(%arg0: i32) -> (i32, i32, i32) {
    %c0_i32 = arith.constant 0 : i32
    %c0_i32_0 = arith.constant 0 : i32
    %c0_i32_1 = arith.constant 0 : i32
    %c0_i32_2 = arith.constant 0 : i32
    return %c0_i32, %c0_i32_0, %c0_i32_1 : i32, i32, i32
  }
  func.func @transform_2(%arg0: i32) -> (i32, i32, i32) {
    %c0_i32 = arith.constant 0 : i32
    %c0_i32_0 = arith.constant 0 : i32
    %c0_i32_1 = arith.constant 0 : i32
    %c0_i32_2 = arith.constant 0 : i32
    return %c0_i32, %c0_i32_0, %c0_i32_1 : i32, i32, i32
  }
  func.func @transform_3(%arg0: i32) -> (i32, i32) {
    %c0_i32 = arith.constant 0 : i32
    %c0_i32_0 = arith.constant 0 : i32
    %c0_i32_1 = arith.constant 0 : i32
    return %c0_i32, %c0_i32_0 : i32, i32
  }
  func.func @transform_4(%arg0: i32) -> (i32, i32) {
    %c0_i32 = arith.constant 0 : i32
    %c0_i32_0 = arith.constant 0 : i32
    %c0_i32_1 = arith.constant 0 : i32
    return %c0_i32, %c0_i32_0 : i32, i32
  }
  func.func @transform_5(%arg0: i32) -> (i32, i32) {
    %c0_i32 = arith.constant 0 : i32
    %c0_i32_0 = arith.constant 0 : i32
    %c0_i32_1 = arith.constant 0 : i32
    return %c0_i32, %c0_i32_0 : i32, i32
  }
}

</mosaic_0001>

<llo_original>
// kernel: tc_lstm_forward.1
$region0: #{tc_lstm_forward.1}
  #allocation0 [shape = 'u32[]', space=smem, size = 0x4, offset = 0x4, fixed_abs, tag = 'smem constant byte address 0x4 - core index']
  #allocation1 [shape = 'u32[144,128]{1,0:T(1,128)}', space=vmem, size = 0x12000, scoped, tag = 'internal scratch']
  %s0 = inlined_call_operand.vmem [shape: bf16[2,16,128], index: 0, kind: input, shape index: {}]
  %s1 = inlined_call_operand.vmem [shape: s32[2,2,1], index: 1, kind: input, shape index: {}]
  %s2 = inlined_call_operand.vmem [shape: bf16[2,32,128], index: 2, kind: input, shape index: {}]
  %s3 = inlined_call_operand.vmem [shape: f32[64,128], index: 3, kind: input, shape index: {}]
  %s4 = inlined_call_operand.vmem [shape: f32[1,128], index: 4, kind: input, shape index: {}]
  %s5 = inlined_call_operand.hbm [shape: f32[2,128], index: 5, kind: output, shape index: {}]
  %s6 = sld [smem:[#allocation0]]
  $region30: #{tc_lstm_forward.1} parent=0
    _
  %s8 = ssub.s32 1, %s6
  %s9 = scalar_select 0, %s8, %s6
  $region1: #{tc_lstm_forward.1} parent=0
    #allocation2 [shape = 'u8[1024]{0}', space=vmem, size = 0x400, scoped, tag = 'output window, operand 0, single buffered']
    #allocation3 [shape = 's32[1]{0}', space=sflag, size = 0x4, scoped, tag = 'scoped memory for tc_lstm_forward.1']
    %10 = vsyncpa [#allocation3], 0
    // Predicated region
    $region2: #{tc_lstm_forward.1} parent=1 // pred_check
      _
    $region3: #{tc_lstm_forward.1} parent=1 // pred_check_branch
      %12 = sbr.rel (0) target = $region5
    $region4: #{tc_lstm_forward.1} parent=1 // pred_region
      _
    $region5: #{tc_lstm_forward.1} parent=1 // pred_fallthru
      _
    // Predicated region
    $region6: #{tc_lstm_forward.1} parent=1 // pred_check
      _
    $region7: #{tc_lstm_forward.1} parent=1 // pred_check_branch
      %14 = sbr.rel (0) target = $region9
    $region8: #{tc_lstm_forward.1} parent=1 // pred_region
      _
    $region9: #{tc_lstm_forward.1} parent=1 // pred_fallthru
      _
    // Predicated region
    $region10: #{tc_lstm_forward.1} parent=1 // pred_check
      _
    $region11: #{tc_lstm_forward.1} parent=1 // pred_check_branch
      %16 = sbr.rel (0) target = $region13
    $region12: #{tc_lstm_forward.1} parent=1 // pred_region
      _
    $region13: #{tc_lstm_forward.1} parent=1 // pred_fallthru
      _
    // Predicated region
    $region14: #{tc_lstm_forward.1} parent=1 // pred_check
      _
    $region15: #{tc_lstm_forward.1} parent=1 // pred_check_branch
      %18 = sbr.rel (0) target = $region17
    $region16: #{tc_lstm_forward.1} parent=1 // pred_region
      _
    $region17: #{tc_lstm_forward.1} parent=1 // pred_fallthru
      _
    // Predicated region
    $region18: #{tc_lstm_forward.1} parent=1 // pred_check
      _
    $region19: #{tc_lstm_forward.1} parent=1 // pred_check_branch
      %20 = sbr.rel (0) target = $region21
    $region20: #{tc_lstm_forward.1} parent=1 // pred_region
      _
    $region21: #{tc_lstm_forward.1} parent=1 // pred_fallthru
      _
    %v22 = vld [vmem:[%s0] sm:$0xf]
    %v23 = vld [vmem:[%s0 + $0x4] sm:$0xf]
    %v24 = vunpack.c.l.bf16 %v22
    %v25 = vunpack.c.l.bf16 %v23
    %s26 = scalar_lea.vmem %s0, 8
    %v27 = vld [vmem:[%s26] sm:$0xf]
    %v28 = vld [vmem:[%s26 + $0x4] sm:$0xf]
    %v29 = vunpack.c.l.bf16 %v27
    %v30 = vunpack.c.l.bf16 %v28
    %v31 = vld [vmem:[%s2] sm:$0xf]
    %v32 = vld [vmem:[%s2 + $0x4] sm:$0xf]
    %v33 = vld [vmem:[%s2 + $0x8] sm:$0xf]
    %v34 = vld [vmem:[%s2 + $0xc] sm:$0xf]
    %s35 = scalar_lea.vmem %s2, 16
    %v36 = vld [vmem:[%s35] sm:$0xf]
    %v37 = vld [vmem:[%s35 + $0x4] sm:$0xf]
    %v38 = vld [vmem:[%s35 + $0x8] sm:$0xf]
    %v39 = vld [vmem:[%s35 + $0xc] sm:$0xf]
    %v40 = vld [vmem:[%s1] sm:$0x3]
    %41 = vset.pattern.permute.xlu0 0
    %42 = vperm.xlu0 %41, %v40
    %v43 = vpop.permute.xlu0 %42
    %s44 = scalar_lea.vmem %s1, 2
    %v45 = vld [vmem:[%s44] sm:$0x3]
    %46 = vset.pattern.permute.xlu0 0
    %47 = vperm.xlu0 %46, %v45
    %v48 = vpop.permute.xlu0 %47
    %v53 = vunpack.c.l.b16 %v31
    %v54 = vunpack.c.l.b16 %v32
    %v55 = vunpack.c.l.b16 %v33
    %v56 = vunpack.c.l.b16 %v34
    %v57 = vpack.c.b16 %v54, %v53
    %v58 = vpack.c.b16 %v56, %v55
    %vm61 = vcmask 261120
    %v63 = vsel %vm61, 0, 0
    %65 = vmatprep.subr.bf16.mxu0 0
    %66 = vmatpush1.bf16.msra.mxu0 %v57
    %67 = vmatprep.subr.bf16.mxu0 0
    %68 = vmatpush1.bf16.msra.mxu0 %v58
    %69 = vmatprep.subr.bf16.mxu0 0
    %70 = vmatpush1.bf16.msra.mxu0 0
    %71 = vmatprep.subr.bf16.mxu0 0
    %72 = vmatpush1.bf16.msra.mxu0 0
    %73 = vmatprep.subr.bf16.mxu0 0
    %74 = vmatpush1.bf16.msra.mxu0 0
    %75 = vmatprep.subr.bf16.mxu0 0
    %76 = vmatpush1.bf16.msra.mxu0 0
    %77 = vmatprep.subr.bf16.mxu0 0
    %78 = vmatpush1.bf16.msra.mxu0 0
    %79 = vmatprep.subr.bf16.mxu0 0
    %80 = vmatpush1.bf16.msra.mxu0 0
    %81 = vmatprep.subr.bf16.mxu0 0
    %82 = vmatpush1.bf16.msra.mxu0 0
    %83 = vmatprep.subr.bf16.mxu0 0
    %84 = vmatpush1.bf16.msra.mxu0 0
    %85 = vmatprep.subr.bf16.mxu0 0
    %86 = vmatpush1.bf16.msra.mxu0 0
    %87 = vmatprep.subr.bf16.mxu0 0
    %88 = vmatpush1.bf16.msra.mxu0 0
    %89 = vmatprep.subr.bf16.mxu0 0
    %90 = vmatpush1.bf16.msra.mxu0 0
    %91 = vmatprep.subr.bf16.mxu0 0
    %92 = vmatpush1.bf16.msra.mxu0 0
    %93 = vmatprep.subr.bf16.mxu0 0
    %94 = vmatpush1.bf16.msra.mxu0 0
    %95 = vmatprep.subr.bf16.mxu0 0
    %96 = vmatpush1.bf16.msra.mxu0 0
    %97 = vmatprep.mubr.bf16.mxu0 0
    %98 = vmatmul.mubr.bf16.gmra.mrb[0].mxu0 %v63
    %v99 = vpop.f32.mrb[0].mxu0
    %v100 = vadd.f32 0.0, %v99
    %v101 = vpop.f32.mrb[0].mxu0
    %v102 = vpop.f32.mrb[0].mxu0
    %v103 = vpop.f32.mrb[0].mxu0
    %104 = vdwg.mxu0
    %v105 = vadd.f32 %v24, %v100
    %v106 = vxor.u32 %v105, 2147483648
    %v107 = vmul.f32 %v106, 1.442695
    %v108 = vpow.pop %v107
    %v109 = vadd.f32 %v108, 1.0
    %v110 = vrcp.pop %v109
    %v111 = vmul.f32 1.0, %v110
    %v112 = vtanh.pop %v105
    %v113 = vmul.f32 %v111, 0.0
    %115 = vrot.lane.b32.xlu0 %v112, 32
    %v116 = vpop.permute.xlu0 %115
    %v118 = vmul.f32 %v111, %v116
    %120 = vrot.lane.b32.xlu0 %v118, 32
    %v121 = vpop.permute.xlu0 %120
    %v123 = vadd.f32 %v113, %v121
    %v124 = vtanh.pop %v123
    %126 = vrot.lane.b32.xlu0 %v124, 32
    %v127 = vpop.permute.xlu0 %126
    %v129 = vmul.f32 %v111, %v127
    %vm130 = vcmp.gt.s32.totalorder %v43, 0
    %v131 = vsel %vm130, %v129, 0.0
    %v132 = vsel %vm130, %v123, 0.0
    %v137 = vunpack.c.l.b16 %v36
    %v138 = vunpack.c.l.b16 %v37
    %v139 = vunpack.c.l.b16 %v38
    %v140 = vunpack.c.l.b16 %v39
    %v141 = vpack.c.b16 %v138, %v137
    %v142 = vpack.c.b16 %v140, %v139
    %145 = vmatprep.subr.bf16.mxu0 0
    %146 = vmatpush1.bf16.msra.mxu0 %v141
    %147 = vmatprep.subr.bf16.mxu0 0
    %148 = vmatpush1.bf16.msra.mxu0 %v142
    %149 = vmatprep.subr.bf16.mxu0 0
    %150 = vmatpush1.bf16.msra.mxu0 0
    %151 = vmatprep.subr.bf16.mxu0 0
    %152 = vmatpush1.bf16.msra.mxu0 0
    %153 = vmatprep.subr.bf16.mxu0 0
    %154 = vmatpush1.bf16.msra.mxu0 0
    %155 = vmatprep.subr.bf16.mxu0 0
    %156 = vmatpush1.bf16.msra.mxu0 0
    %157 = vmatprep.subr.bf16.mxu0 0
    %158 = vmatpush1.bf16.msra.mxu0 0
    %159 = vmatprep.subr.bf16.mxu0 0
    %160 = vmatpush1.bf16.msra.mxu0 0
    %161 = vmatprep.subr.bf16.mxu0 0
    %162 = vmatpush1.bf16.msra.mxu0 0
    %163 = vmatprep.subr.bf16.mxu0 0
    %164 = vmatpush1.bf16.msra.mxu0 0
    %165 = vmatprep.subr.bf16.mxu0 0
    %166 = vmatpush1.bf16.msra.mxu0 0
    %167 = vmatprep.subr.bf16.mxu0 0
    %168 = vmatpush1.bf16.msra.mxu0 0
    %169 = vmatprep.subr.bf16.mxu0 0
    %170 = vmatpush1.bf16.msra.mxu0 0
    %171 = vmatprep.subr.bf16.mxu0 0
    %172 = vmatpush1.bf16.msra.mxu0 0
    %173 = vmatprep.subr.bf16.mxu0 0
    %174 = vmatpush1.bf16.msra.mxu0 0
    %175 = vmatprep.subr.bf16.mxu0 0
    %176 = vmatpush1.bf16.msra.mxu0 0
    %177 = vmatprep.mubr.bf16.mxu0 0
    %178 = vmatmul.mubr.bf16.gmra.mrb[0].mxu0 %v63
    %v179 = vpop.f32.mrb[0].mxu0
    %v180 = vadd.f32 0.0, %v179
    %v181 = vpop.f32.mrb[0].mxu0
    %v182 = vpop.f32.mrb[0].mxu0
    %v183 = vpop.f32.mrb[0].mxu0
    %184 = vdwg.mxu0
    %v185 = vadd.f32 %v29, %v180
    %v186 = vxor.u32 %v185, 2147483648
    %v187 = vmul.f32 %v186, 1.442695
    %v188 = vpow.pop %v187
    %v189 = vadd.f32 %v188, 1.0
    %v190 = vrcp.pop %v189
    %v191 = vmul.f32 1.0, %v190
    %v192 = vtanh.pop %v185
    %v193 = vmul.f32 %v191, 0.0
    %195 = vrot.lane.b32.xlu0 %v192, 32
    %v196 = vpop.permute.xlu0 %195
    %v198 = vmul.f32 %v191, %v196
    %200 = vrot.lane.b32.xlu0 %v198, 32
    %v201 = vpop.permute.xlu0 %200
    %v203 = vadd.f32 %v193, %v201
    %v204 = vtanh.pop %v203
    %206 = vrot.lane.b32.xlu0 %v204, 32
    %v207 = vpop.permute.xlu0 %206
    %v209 = vmul.f32 %v191, %v207
    %vm210 = vcmp.gt.s32.totalorder %v48, 0
    %v211 = vsel %vm210, %v209, 0.0
    %v212 = vsel %vm210, %v203, 0.0
    %v213 = vpack.c.bf16 %v131, %v131
    %215 = vrot.lane.b32.xlu0 %v213, 64
    %v216 = vpop.permute.xlu0 %215
    %v218 = vsel %vm61, %v216, 0
    %220 = vmatprep.subr.bf16.mxu0 0
    %221 = vmatpush1.bf16.msra.mxu0 %v57
    %222 = vmatprep.subr.bf16.mxu0 0
    %223 = vmatpush1.bf16.msra.mxu0 %v58
    %224 = vmatprep.subr.bf16.mxu0 0
    %225 = vmatpush1.bf16.msra.mxu0 0
    %226 = vmatprep.subr.bf16.mxu0 0
    %227 = vmatpush1.bf16.msra.mxu0 0
    %228 = vmatprep.subr.bf16.mxu0 0
    %229 = vmatpush1.bf16.msra.mxu0 0
    %230 = vmatprep.subr.bf16.mxu0 0
    %231 = vmatpush1.bf16.msra.mxu0 0
    %232 = vmatprep.subr.bf16.mxu0 0
    %233 = vmatpush1.bf16.msra.mxu0 0
    %234 = vmatprep.subr.bf16.mxu0 0
    %235 = vmatpush1.bf16.msra.mxu0 0
    %236 = vmatprep.subr.bf16.mxu0 0
    %237 = vmatpush1.bf16.msra.mxu0 0
    %238 = vmatprep.subr.bf16.mxu0 0
    %239 = vmatpush1.bf16.msra.mxu0 0
    %240 = vmatprep.subr.bf16.mxu0 0
    %241 = vmatpush1.bf16.msra.mxu0 0
    %242 = vmatprep.subr.bf16.mxu0 0
    %243 = vmatpush1.bf16.msra.mxu0 0
    %244 = vmatprep.subr.bf16.mxu0 0
    %245 = vmatpush1.bf16.msra.mxu0 0
    %246 = vmatprep.subr.bf16.mxu0 0
    %247 = vmatpush1.bf16.msra.mxu0 0
    %248 = vmatprep.subr.bf16.mxu0 0
    %249 = vmatpush1.bf16.msra.mxu0 0
    %250 = vmatprep.subr.bf16.mxu0 0
    %251 = vmatpush1.bf16.msra.mxu0 0
    %252 = vmatprep.mubr.bf16.mxu0 0
    %253 = vmatmul.mubr.bf16.gmra.mrb[0].mxu0 %v218
    %v254 = vpop.f32.mrb[0].mxu0
    %v255 = vadd.f32 0.0, %v254
    %v256 = vpop.f32.mrb[0].mxu0
    %v257 = vpop.f32.mrb[0].mxu0
    %v258 = vpop.f32.mrb[0].mxu0
    %259 = vdwg.mxu0
    %v261 = vrot.slane %v255, 6
    %v263 = vadd.f32 %v24, %v261
    %v264 = vxor.u32 %v263, 2147483648
    %v265 = vmul.f32 %v264, 1.442695
    %v266 = vpow.pop %v265
    %v267 = vadd.f32 %v266, 1.0
    %v268 = vrcp.pop %v267
    %v269 = vmul.f32 1.0, %v268
    %v270 = vtanh.pop %v263
    %v272 = vrot.slane %v132, 6
    %v274 = vmul.f32 %v269, %v272
    %276 = vrot.lane.b32.xlu0 %v270, 32
    %v277 = vpop.permute.xlu0 %276
    %v279 = vmul.f32 %v269, %v277
    %281 = vrot.lane.b32.xlu0 %v279, 32
    %v282 = vpop.permute.xlu0 %281
    %v284 = vadd.f32 %v274, %v282
    %v285 = vtanh.pop %v284
    %287 = vrot.lane.b32.xlu0 %v285, 32
    %v288 = vpop.permute.xlu0 %287
    %v290 = vmul.f32 %v269, %v288
    %vm291 = vcmp.gt.s32.totalorder %v43, 1
    %v293 = vrot.slane %v290, 2
    %294 = vrot.lane.b32.xlu0 %v293, 64
    %v295 = vpop.permute.xlu0 %294
    %298 = vrot.lane.b32.xlu0 %v131, 64
    %v299 = vpop.permute.xlu0 %298
    %v301 = vsel %vm291, %v295, %v299
    %v303 = vrot.slane %v284, 2
    %304 = vrot.lane.b32.xlu0 %v303, 96
    %v305 = vpop.permute.xlu0 %304
    %307 = vrot.lane.b32.xlu0 %v132, 96
    %v308 = vpop.permute.xlu0 %307
    %v310 = vsel %vm291, %v305, %v308
    %v311 = vpack.c.bf16 %v211, %v211
    %313 = vrot.lane.b32.xlu0 %v311, 64
    %v314 = vpop.permute.xlu0 %313
    %v316 = vsel %vm61, %v314, 0
    %318 = vmatprep.subr.bf16.mxu0 0
    %319 = vmatpush1.bf16.msra.mxu0 %v141
    %320 = vmatprep.subr.bf16.mxu0 0
    %321 = vmatpush1.bf16.msra.mxu0 %v142
    %322 = vmatprep.subr.bf16.mxu0 0
    %323 = vmatpush1.bf16.msra.mxu0 0
    %324 = vmatprep.subr.bf16.mxu0 0
    %325 = vmatpush1.bf16.msra.mxu0 0
    %326 = vmatprep.subr.bf16.mxu0 0
    %327 = vmatpush1.bf16.msra.mxu0 0
    %328 = vmatprep.subr.bf16.mxu0 0
    %329 = vmatpush1.bf16.msra.mxu0 0
    %330 = vmatprep.subr.bf16.mxu0 0
    %331 = vmatpush1.bf16.msra.mxu0 0
    %332 = vmatprep.subr.bf16.mxu0 0
    %333 = vmatpush1.bf16.msra.mxu0 0
    %334 = vmatprep.subr.bf16.mxu0 0
    %335 = vmatpush1.bf16.msra.mxu0 0
    %336 = vmatprep.subr.bf16.mxu0 0
    %337 = vmatpush1.bf16.msra.mxu0 0
    %338 = vmatprep.subr.bf16.mxu0 0
    %339 = vmatpush1.bf16.msra.mxu0 0
    %340 = vmatprep.subr.bf16.mxu0 0
    %341 = vmatpush1.bf16.msra.mxu0 0
    %342 = vmatprep.subr.bf16.mxu0 0
    %343 = vmatpush1.bf16.msra.mxu0 0
    %344 = vmatprep.subr.bf16.mxu0 0
    %345 = vmatpush1.bf16.msra.mxu0 0
    %346 = vmatprep.subr.bf16.mxu0 0
    %347 = vmatpush1.bf16.msra.mxu0 0
    %348 = vmatprep.subr.bf16.mxu0 0
    %349 = vmatpush1.bf16.msra.mxu0 0
    %350 = vmatprep.mubr.bf16.mxu0 0
    %351 = vmatmul.mubr.bf16.gmra.mrb[0].mxu0 %v316
    %v352 = vpop.f32.mrb[0].mxu0
    %v353 = vadd.f32 0.0, %v352
    %v354 = vpop.f32.mrb[0].mxu0
    %v355 = vpop.f32.mrb[0].mxu0
    %v356 = vpop.f32.mrb[0].mxu0
    %357 = vdwg.mxu0
    %v359 = vrot.slane %v353, 6
    %v361 = vadd.f32 %v29, %v359
    %v362 = vxor.u32 %v361, 2147483648
    %v363 = vmul.f32 %v362, 1.442695
    %v364 = vpow.pop %v363
    %v365 = vadd.f32 %v364, 1.0
    %v366 = vrcp.pop %v365
    %v367 = vmul.f32 1.0, %v366
    %v368 = vtanh.pop %v361
    %v370 = vrot.slane %v212, 6
    %v372 = vmul.f32 %v367, %v370
    %374 = vrot.lane.b32.xlu0 %v368, 32
    %v375 = vpop.permute.xlu0 %374
    %v377 = vmul.f32 %v367, %v375
    %379 = vrot.lane.b32.xlu0 %v377, 32
    %v380 = vpop.permute.xlu0 %379
    %v382 = vadd.f32 %v372, %v380
    %v383 = vtanh.pop %v382
    %385 = vrot.lane.b32.xlu0 %v383, 32
    %v386 = vpop.permute.xlu0 %385
    %v388 = vmul.f32 %v367, %v386
    %vm389 = vcmp.gt.s32.totalorder %v48, 1
    %v391 = vrot.slane %v388, 2
    %392 = vrot.lane.b32.xlu0 %v391, 64
    %v393 = vpop.permute.xlu0 %392
    %396 = vrot.lane.b32.xlu0 %v211, 64
    %v397 = vpop.permute.xlu0 %396
    %v399 = vsel %vm389, %v393, %v397
    %v401 = vrot.slane %v382, 2
    %402 = vrot.lane.b32.xlu0 %v401, 96
    %v403 = vpop.permute.xlu0 %402
    %405 = vrot.lane.b32.xlu0 %v212, 96
    %v406 = vpop.permute.xlu0 %405
    %v408 = vsel %vm389, %v403, %v406
    %v409 = vpack.c.bf16 %v301, %v301
    %v411 = vsel %vm61, %v409, 0
    %413 = vmatprep.subr.bf16.mxu0 0
    %414 = vmatpush1.bf16.msra.mxu0 %v57
    %415 = vmatprep.subr.bf16.mxu0 0
    %416 = vmatpush1.bf16.msra.mxu0 %v58
    %417 = vmatprep.subr.bf16.mxu0 0
    %418 = vmatpush1.bf16.msra.mxu0 0
    %419 = vmatprep.subr.bf16.mxu0 0
    %420 = vmatpush1.bf16.msra.mxu0 0
    %421 = vmatprep.subr.bf16.mxu0 0
    %422 = vmatpush1.bf16.msra.mxu0 0
    %423 = vmatprep.subr.bf16.mxu0 0
    %424 = vmatpush1.bf16.msra.mxu0 0
    %425 = vmatprep.subr.bf16.mxu0 0
    %426 = vmatpush1.bf16.msra.mxu0 0
    %427 = vmatprep.subr.bf16.mxu0 0
    %428 = vmatpush1.bf16.msra.mxu0 0
    %429 = vmatprep.subr.bf16.mxu0 0
    %430 = vmatpush1.bf16.msra.mxu0 0
    %431 = vmatprep.subr.bf16.mxu0 0
    %432 = vmatpush1.bf16.msra.mxu0 0
    %433 = vmatprep.subr.bf16.mxu0 0
    %434 = vmatpush1.bf16.msra.mxu0 0
    %435 = vmatprep.subr.bf16.mxu0 0
    %436 = vmatpush1.bf16.msra.mxu0 0
    %437 = vmatprep.subr.bf16.mxu0 0
    %438 = vmatpush1.bf16.msra.mxu0 0
    %439 = vmatprep.subr.bf16.mxu0 0
    %440 = vmatpush1.bf16.msra.mxu0 0
    %441 = vmatprep.subr.bf16.mxu0 0
    %442 = vmatpush1.bf16.msra.mxu0 0
    %443 = vmatprep.subr.bf16.mxu0 0
    %444 = vmatpush1.bf16.msra.mxu0 0
    %445 = vmatprep.mubr.bf16.mxu0 0
    %446 = vmatmul.mubr.bf16.gmra.mrb[0].mxu0 %v411
    %v447 = vpop.f32.mrb[0].mxu0
    %v448 = vadd.f32 0.0, %v447
    %v449 = vpop.f32.mrb[0].mxu0
    %v450 = vpop.f32.mrb[0].mxu0
    %v451 = vpop.f32.mrb[0].mxu0
    %452 = vdwg.mxu0
    %v454 = vrot.slane %v448, 4
    %v456 = vadd.f32 %v24, %v454
    %v457 = vxor.u32 %v456, 2147483648
    %v458 = vmul.f32 %v457, 1.442695
    %v459 = vpow.pop %v458
    %v460 = vadd.f32 %v459, 1.0
    %v461 = vrcp.pop %v460
    %v462 = vmul.f32 1.0, %v461
    %v463 = vtanh.pop %v456
    %v465 = vrot.slane %v310, 4
    %466 = vrot.lane.b32.xlu0 %v465, 32
    %v467 = vpop.permute.xlu0 %466
    %v469 = vmul.f32 %v462, %v467
    %471 = vrot.lane.b32.xlu0 %v463, 32
    %v472 = vpop.permute.xlu0 %471
    %v474 = vmul.f32 %v462, %v472
    %476 = vrot.lane.b32.xlu0 %v474, 32
    %v477 = vpop.permute.xlu0 %476
    %v479 = vadd.f32 %v469, %v477
    %v480 = vtanh.pop %v479
    %482 = vrot.lane.b32.xlu0 %v480, 32
    %v483 = vpop.permute.xlu0 %482
    %v485 = vmul.f32 %v462, %v483
    %vm486 = vcmp.gt.s32.totalorder %v43, 2
    %v488 = vrot.slane %v485, 4
    %489 = vrot.lane.b32.xlu0 %v488, 64
    %v490 = vpop.permute.xlu0 %489
    %v492 = vsel %vm486, %v490, %v301
    %v494 = vrot.slane %v479, 4
    %495 = vrot.lane.b32.xlu0 %v494, 96
    %v496 = vpop.permute.xlu0 %495
    %v498 = vsel %vm486, %v496, %v310
    %v499 = vpack.c.bf16 %v399, %v399
    %v501 = vsel %vm61, %v499, 0
    %503 = vmatprep.subr.bf16.mxu0 0
    %504 = vmatpush1.bf16.msra.mxu0 %v141
    %505 = vmatprep.subr.bf16.mxu0 0
    %506 = vmatpush1.bf16.msra.mxu0 %v142
    %507 = vmatprep.subr.bf16.mxu0 0
    %508 = vmatpush1.bf16.msra.mxu0 0
    %509 = vmatprep.subr.bf16.mxu0 0
    %510 = vmatpush1.bf16.msra.mxu0 0
    %511 = vmatprep.subr.bf16.mxu0 0
    %512 = vmatpush1.bf16.msra.mxu0 0
    %513 = vmatprep.subr.bf16.mxu0 0
    %514 = vmatpush1.bf16.msra.mxu0 0
    %515 = vmatprep.subr.bf16.mxu0 0
    %516 = vmatpush1.bf16.msra.mxu0 0
    %517 = vmatprep.subr.bf16.mxu0 0
    %518 = vmatpush1.bf16.msra.mxu0 0
    %519 = vmatprep.subr.bf16.mxu0 0
    %520 = vmatpush1.bf16.msra.mxu0 0
    %521 = vmatprep.subr.bf16.mxu0 0
    %522 = vmatpush1.bf16.msra.mxu0 0
    %523 = vmatprep.subr.bf16.mxu0 0
    %524 = vmatpush1.bf16.msra.mxu0 0
    %525 = vmatprep.subr.bf16.mxu0 0
    %526 = vmatpush1.bf16.msra.mxu0 0
    %527 = vmatprep.subr.bf16.mxu0 0
    %528 = vmatpush1.bf16.msra.mxu0 0
    %529 = vmatprep.subr.bf16.mxu0 0
    %530 = vmatpush1.bf16.msra.mxu0 0
    %531 = vmatprep.subr.bf16.mxu0 0
    %532 = vmatpush1.bf16.msra.mxu0 0
    %533 = vmatprep.subr.bf16.mxu0 0
    %534 = vmatpush1.bf16.msra.mxu0 0
    %535 = vmatprep.mubr.bf16.mxu0 0
    %536 = vmatmul.mubr.bf16.gmra.mrb[0].mxu0 %v501
    %v537 = vpop.f32.mrb[0].mxu0
    %v538 = vadd.f32 0.0, %v537
    %v539 = vpop.f32.mrb[0].mxu0
    %v540 = vpop.f32.mrb[0].mxu0
    %v541 = vpop.f32.mrb[0].mxu0
    %542 = vdwg.mxu0
    %v544 = vrot.slane %v538, 4
    %v546 = vadd.f32 %v29, %v544
    %v547 = vxor.u32 %v546, 2147483648
    %v548 = vmul.f32 %v547, 1.442695
    %v549 = vpow.pop %v548
    %v550 = vadd.f32 %v549, 1.0
    %v551 = vrcp.pop %v550
    %v552 = vmul.f32 1.0, %v551
    %v553 = vtanh.pop %v546
    %v555 = vrot.slane %v408, 4
    %556 = vrot.lane.b32.xlu0 %v555, 32
    %v557 = vpop.permute.xlu0 %556
    %v559 = vmul.f32 %v552, %v557
    %561 = vrot.lane.b32.xlu0 %v553, 32
    %v562 = vpop.permute.xlu0 %561
    %v564 = vmul.f32 %v552, %v562
    %566 = vrot.lane.b32.xlu0 %v564, 32
    %v567 = vpop.permute.xlu0 %566
    %v569 = vadd.f32 %v559, %v567
    %v570 = vtanh.pop %v569
    %572 = vrot.lane.b32.xlu0 %v570, 32
    %v573 = vpop.permute.xlu0 %572
    %v575 = vmul.f32 %v552, %v573
    %vm576 = vcmp.gt.s32.totalorder %v48, 2
    %v578 = vrot.slane %v575, 4
    %579 = vrot.lane.b32.xlu0 %v578, 64
    %v580 = vpop.permute.xlu0 %579
    %v582 = vsel %vm576, %v580, %v399
    %v584 = vrot.slane %v569, 4
    %585 = vrot.lane.b32.xlu0 %v584, 96
    %v586 = vpop.permute.xlu0 %585
    %v588 = vsel %vm576, %v586, %v408
    %v589 = vpack.c.bf16 %v492, %v492
    %v591 = vsel %vm61, %v589, 0
    %593 = vmatprep.subr.bf16.mxu0 0
    %594 = vmatpush1.bf16.msra.mxu0 %v57
    %595 = vmatprep.subr.bf16.mxu0 0
    %596 = vmatpush1.bf16.msra.mxu0 %v58
    %597 = vmatprep.subr.bf16.mxu0 0
    %598 = vmatpush1.bf16.msra.mxu0 0
    %599 = vmatprep.subr.bf16.mxu0 0
    %600 = vmatpush1.bf16.msra.mxu0 0
    %601 = vmatprep.subr.bf16.mxu0 0
    %602 = vmatpush1.bf16.msra.mxu0 0
    %603 = vmatprep.subr.bf16.mxu0 0
    %604 = vmatpush1.bf16.msra.mxu0 0
    %605 = vmatprep.subr.bf16.mxu0 0
    %606 = vmatpush1.bf16.msra.mxu0 0
    %607 = vmatprep.subr.bf16.mxu0 0
    %608 = vmatpush1.bf16.msra.mxu0 0
    %609 = vmatprep.subr.bf16.mxu0 0
    %610 = vmatpush1.bf16.msra.mxu0 0
    %611 = vmatprep.subr.bf16.mxu0 0
    %612 = vmatpush1.bf16.msra.mxu0 0
    %613 = vmatprep.subr.bf16.mxu0 0
    %614 = vmatpush1.bf16.msra.mxu0 0
    %615 = vmatprep.subr.bf16.mxu0 0
    %616 = vmatpush1.bf16.msra.mxu0 0
    %617 = vmatprep.subr.bf16.mxu0 0
    %618 = vmatpush1.bf16.msra.mxu0 0
    %619 = vmatprep.subr.bf16.mxu0 0
    %620 = vmatpush1.bf16.msra.mxu0 0
    %621 = vmatprep.subr.bf16.mxu0 0
    %622 = vmatpush1.bf16.msra.mxu0 0
    %623 = vmatprep.subr.bf16.mxu0 0
    %624 = vmatpush1.bf16.msra.mxu0 0
    %625 = vmatprep.mubr.bf16.mxu0 0
    %626 = vmatmul.mubr.bf16.gmra.mrb[0].mxu0 %v591
    %v627 = vpop.f32.mrb[0].mxu0
    %v628 = vadd.f32 0.0, %v627
    %v629 = vpop.f32.mrb[0].mxu0
    %v630 = vpop.f32.mrb[0].mxu0
    %v631 = vpop.f32.mrb[0].mxu0
    %632 = vdwg.mxu0
    %v634 = vrot.slane %v628, 2
    %v636 = vadd.f32 %v24, %v634
    %v637 = vxor.u32 %v636, 2147483648
    %v638 = vmul.f32 %v637, 1.442695
    %v639 = vpow.pop %v638
    %v640 = vadd.f32 %v639, 1.0
    %v641 = vrcp.pop %v640
    %v642 = vmul.f32 1.0, %v641
    %v643 = vtanh.pop %v636
    %v645 = vrot.slane %v498, 2
    %646 = vrot.lane.b32.xlu0 %v645, 32
    %v647 = vpop.permute.xlu0 %646
    %v649 = vmul.f32 %v642, %v647
    %651 = vrot.lane.b32.xlu0 %v643, 32
    %v652 = vpop.permute.xlu0 %651
    %v654 = vmul.f32 %v642, %v652
    %656 = vrot.lane.b32.xlu0 %v654, 32
    %v657 = vpop.permute.xlu0 %656
    %v659 = vadd.f32 %v649, %v657
    %v660 = vtanh.pop %v659
    %662 = vrot.lane.b32.xlu0 %v660, 32
    %v663 = vpop.permute.xlu0 %662
    %v665 = vmul.f32 %v642, %v663
    %vm666 = vcmp.gt.s32.totalorder %v43, 3
    %v668 = vrot.slane %v665, 6
    %669 = vrot.lane.b32.xlu0 %v668, 64
    %v670 = vpop.permute.xlu0 %669
    %v672 = vsel %vm666, %v670, %v492
    %v674 = vrot.slane %v659, 6
    %675 = vrot.lane.b32.xlu0 %v674, 96
    %v676 = vpop.permute.xlu0 %675
    %v678 = vsel %vm666, %v676, %v498
    %v679 = vpack.c.bf16 %v582, %v582
    %v681 = vsel %vm61, %v679, 0
    %683 = vmatprep.subr.bf16.mxu0 0
    %684 = vmatpush1.bf16.msra.mxu0 %v141
    %685 = vmatprep.subr.bf16.mxu0 0
    %686 = vmatpush1.bf16.msra.mxu0 %v142
    %687 = vmatprep.subr.bf16.mxu0 0
    %688 = vmatpush1.bf16.msra.mxu0 0
    %689 = vmatprep.subr.bf16.mxu0 0
    %690 = vmatpush1.bf16.msra.mxu0 0
    %691 = vmatprep.subr.bf16.mxu0 0
    %692 = vmatpush1.bf16.msra.mxu0 0
    %693 = vmatprep.subr.bf16.mxu0 0
    %694 = vmatpush1.bf16.msra.mxu0 0
    %695 = vmatprep.subr.bf16.mxu0 0
    %696 = vmatpush1.bf16.msra.mxu0 0
    %697 = vmatprep.subr.bf16.mxu0 0
    %698 = vmatpush1.bf16.msra.mxu0 0
    %699 = vmatprep.subr.bf16.mxu0 0
    %700 = vmatpush1.bf16.msra.mxu0 0
    %701 = vmatprep.subr.bf16.mxu0 0
    %702 = vmatpush1.bf16.msra.mxu0 0
    %703 = vmatprep.subr.bf16.mxu0 0
    %704 = vmatpush1.bf16.msra.mxu0 0
    %705 = vmatprep.subr.bf16.mxu0 0
    %706 = vmatpush1.bf16.msra.mxu0 0
    %707 = vmatprep.subr.bf16.mxu0 0
    %708 = vmatpush1.bf16.msra.mxu0 0
    %709 = vmatprep.subr.bf16.mxu0 0
    %710 = vmatpush1.bf16.msra.mxu0 0
    %711 = vmatprep.subr.bf16.mxu0 0
    %712 = vmatpush1.bf16.msra.mxu0 0
    %713 = vmatprep.subr.bf16.mxu0 0
    %714 = vmatpush1.bf16.msra.mxu0 0
    %715 = vmatprep.mubr.bf16.mxu0 0
    %716 = vmatmul.mubr.bf16.gmra.mrb[0].mxu0 %v681
    %v717 = vpop.f32.mrb[0].mxu0
    %v718 = vadd.f32 0.0, %v717
    %v719 = vpop.f32.mrb[0].mxu0
    %v720 = vpop.f32.mrb[0].mxu0
    %v721 = vpop.f32.mrb[0].mxu0
    %722 = vdwg.mxu0
    %v724 = vrot.slane %v718, 2
    %v726 = vadd.f32 %v29, %v724
    %v727 = vxor.u32 %v726, 2147483648
    %v728 = vmul.f32 %v727, 1.442695
    %v729 = vpow.pop %v728
    %v730 = vadd.f32 %v729, 1.0
    %v731 = vrcp.pop %v730
    %v732 = vmul.f32 1.0, %v731
    %v733 = vtanh.pop %v726
    %v735 = vrot.slane %v588, 2
    %736 = vrot.lane.b32.xlu0 %v735, 32
    %v737 = vpop.permute.xlu0 %736
    %v739 = vmul.f32 %v732, %v737
    %741 = vrot.lane.b32.xlu0 %v733, 32
    %v742 = vpop.permute.xlu0 %741
    %v744 = vmul.f32 %v732, %v742
    %746 = vrot.lane.b32.xlu0 %v744, 32
    %v747 = vpop.permute.xlu0 %746
    %v749 = vadd.f32 %v739, %v747
    %v750 = vtanh.pop %v749
    %752 = vrot.lane.b32.xlu0 %v750, 32
    %v753 = vpop.permute.xlu0 %752
    %v755 = vmul.f32 %v732, %v753
    %vm756 = vcmp.gt.s32.totalorder %v48, 3
    %v758 = vrot.slane %v755, 6
    %759 = vrot.lane.b32.xlu0 %v758, 64
    %v760 = vpop.permute.xlu0 %759
    %v762 = vsel %vm756, %v760, %v582
    %v764 = vrot.slane %v749, 6
    %765 = vrot.lane.b32.xlu0 %v764, 96
    %v766 = vpop.permute.xlu0 %765
    %v768 = vsel %vm756, %v766, %v588
    %v769 = vpack.c.bf16 %v672, %v672
    %v771 = vsel %vm61, %v769, 0
    %773 = vmatprep.subr.bf16.mxu0 0
    %774 = vmatpush1.bf16.msra.mxu0 %v57
    %775 = vmatprep.subr.bf16.mxu0 0
    %776 = vmatpush1.bf16.msra.mxu0 %v58
    %777 = vmatprep.subr.bf16.mxu0 0
    %778 = vmatpush1.bf16.msra.mxu0 0
    %779 = vmatprep.subr.bf16.mxu0 0
    %780 = vmatpush1.bf16.msra.mxu0 0
    %781 = vmatprep.subr.bf16.mxu0 0
    %782 = vmatpush1.bf16.msra.mxu0 0
    %783 = vmatprep.subr.bf16.mxu0 0
    %784 = vmatpush1.bf16.msra.mxu0 0
    %785 = vmatprep.subr.bf16.mxu0 0
    %786 = vmatpush1.bf16.msra.mxu0 0
    %787 = vmatprep.subr.bf16.mxu0 0
    %788 = vmatpush1.bf16.msra.mxu0 0
    %789 = vmatprep.subr.bf16.mxu0 0
    %790 = vmatpush1.bf16.msra.mxu0 0
    %791 = vmatprep.subr.bf16.mxu0 0
    %792 = vmatpush1.bf16.msra.mxu0 0
    %793 = vmatprep.subr.bf16.mxu0 0
    %794 = vmatpush1.bf16.msra.mxu0 0
    %795 = vmatprep.subr.bf16.mxu0 0
    %796 = vmatpush1.bf16.msra.mxu0 0
    %797 = vmatprep.subr.bf16.mxu0 0
    %798 = vmatpush1.bf16.msra.mxu0 0
    %799 = vmatprep.subr.bf16.mxu0 0
    %800 = vmatpush1.bf16.msra.mxu0 0
    %801 = vmatprep.subr.bf16.mxu0 0
    %802 = vmatpush1.bf16.msra.mxu0 0
    %803 = vmatprep.subr.bf16.mxu0 0
    %804 = vmatpush1.bf16.msra.mxu0 0
    %805 = vmatprep.mubr.bf16.mxu0 0
    %806 = vmatmul.mubr.bf16.gmra.mrb[0].mxu0 %v771
    %v807 = vpop.f32.mrb[0].mxu0
    %v808 = vadd.f32 0.0, %v807
    %v809 = vpop.f32.mrb[0].mxu0
    %v810 = vpop.f32.mrb[0].mxu0
    %v811 = vpop.f32.mrb[0].mxu0
    %812 = vdwg.mxu0
    %v813 = vadd.f32 %v25, %v808
    %v814 = vxor.u32 %v813, 2147483648
    %v815 = vmul.f32 %v814, 1.442695
    %v816 = vpow.pop %v815
    %v817 = vadd.f32 %v816, 1.0
    %v818 = vrcp.pop %v817
    %v819 = vmul.f32 1.0, %v818
    %v820 = vtanh.pop %v813
    %822 = vrot.lane.b32.xlu0 %v678, 32
    %v823 = vpop.permute.xlu0 %822
    %v825 = vmul.f32 %v819, %v823
    %827 = vrot.lane.b32.xlu0 %v820, 32
    %v828 = vpop.permute.xlu0 %827
    %v830 = vmul.f32 %v819, %v828
    %832 = vrot.lane.b32.xlu0 %v830, 32
    %v833 = vpop.permute.xlu0 %832
    %v835 = vadd.f32 %v825, %v833
    %v836 = vtanh.pop %v835
    %838 = vrot.lane.b32.xlu0 %v836, 32
    %v839 = vpop.permute.xlu0 %838
    %v841 = vmul.f32 %v819, %v839
    %vm842 = vcmp.gt.s32.totalorder %v43, 4
    %844 = vrot.lane.b32.xlu0 %v672, 64
    %v845 = vpop.permute.xlu0 %844
    %v847 = vsel %vm842, %v841, %v845
    %v848 = vsel %vm842, %v835, %v823
    %v849 = vpack.c.bf16 %v762, %v762
    %v851 = vsel %vm61, %v849, 0
    %853 = vmatprep.subr.bf16.mxu0 0
    %854 = vmatpush1.bf16.msra.mxu0 %v141
    %855 = vmatprep.subr.bf16.mxu0 0
    %856 = vmatpush1.bf16.msra.mxu0 %v142
    %857 = vmatprep.subr.bf16.mxu0 0
    %858 = vmatpush1.bf16.msra.mxu0 0
    %859 = vmatprep.subr.bf16.mxu0 0
    %860 = vmatpush1.bf16.msra.mxu0 0
    %861 = vmatprep.subr.bf16.mxu0 0
    %862 = vmatpush1.bf16.msra.mxu0 0
    %863 = vmatprep.subr.bf16.mxu0 0
    %864 = vmatpush1.bf16.msra.mxu0 0
    %865 = vmatprep.subr.bf16.mxu0 0
    %866 = vmatpush1.bf16.msra.mxu0 0
    %867 = vmatprep.subr.bf16.mxu0 0
    %868 = vmatpush1.bf16.msra.mxu0 0
    %869 = vmatprep.subr.bf16.mxu0 0
    %870 = vmatpush1.bf16.msra.mxu0 0
    %871 = vmatprep.subr.bf16.mxu0 0
    %872 = vmatpush1.bf16.msra.mxu0 0
    %873 = vmatprep.subr.bf16.mxu0 0
    %874 = vmatpush1.bf16.msra.mxu0 0
    %875 = vmatprep.subr.bf16.mxu0 0
    %876 = vmatpush1.bf16.msra.mxu0 0
    %877 = vmatprep.subr.bf16.mxu0 0
    %878 = vmatpush1.bf16.msra.mxu0 0
    %879 = vmatprep.subr.bf16.mxu0 0
    %880 = vmatpush1.bf16.msra.mxu0 0
    %881 = vmatprep.subr.bf16.mxu0 0
    %882 = vmatpush1.bf16.msra.mxu0 0
    %883 = vmatprep.subr.bf16.mxu0 0
    %884 = vmatpush1.bf16.msra.mxu0 0
    %885 = vmatprep.mubr.bf16.mxu0 0
    %886 = vmatmul.mubr.bf16.gmra.mrb[0].mxu0 %v851
    %v887 = vpop.f32.mrb[0].mxu0
    %v888 = vadd.f32 0.0, %v887
    %v889 = vpop.f32.mrb[0].mxu0
    %v890 = vpop.f32.mrb[0].mxu0
    %v891 = vpop.f32.mrb[0].mxu0
    %892 = vdwg.mxu0
    %v893 = vadd.f32 %v30, %v888
    %v894 = vxor.u32 %v893, 2147483648
    %v895 = vmul.f32 %v894, 1.442695
    %v896 = vpow.pop %v895
    %v897 = vadd.f32 %v896, 1.0
    %v898 = vrcp.pop %v897
    %v899 = vmul.f32 1.0, %v898
    %v900 = vtanh.pop %v893
    %902 = vrot.lane.b32.xlu0 %v768, 32
    %v903 = vpop.permute.xlu0 %902
    %v905 = vmul.f32 %v899, %v903
    %907 = vrot.lane.b32.xlu0 %v900, 32
    %v908 = vpop.permute.xlu0 %907
    %v910 = vmul.f32 %v899, %v908
    %912 = vrot.lane.b32.xlu0 %v910, 32
    %v913 = vpop.permute.xlu0 %912
    %v915 = vadd.f32 %v905, %v913
    %v916 = vtanh.pop %v915
    %918 = vrot.lane.b32.xlu0 %v916, 32
    %v919 = vpop.permute.xlu0 %918
    %v921 = vmul.f32 %v899, %v919
    %vm922 = vcmp.gt.s32.totalorder %v48, 4
    %924 = vrot.lane.b32.xlu0 %v762, 64
    %v925 = vpop.permute.xlu0 %924
    %v927 = vsel %vm922, %v921, %v925
    %v928 = vsel %vm922, %v915, %v903
    %v929 = vpack.c.bf16 %v847, %v847
    %931 = vrot.lane.b32.xlu0 %v929, 64
    %v932 = vpop.permute.xlu0 %931
    %v934 = vsel %vm61, %v932, 0
    %936 = vmatprep.subr.bf16.mxu0 0
    %937 = vmatpush1.bf16.msra.mxu0 %v57
    %938 = vmatprep.subr.bf16.mxu0 0
    %939 = vmatpush1.bf16.msra.mxu0 %v58
    %940 = vmatprep.subr.bf16.mxu0 0
    %941 = vmatpush1.bf16.msra.mxu0 0
    %942 = vmatprep.subr.bf16.mxu0 0
    %943 = vmatpush1.bf16.msra.mxu0 0
    %944 = vmatprep.subr.bf16.mxu0 0
    %945 = vmatpush1.bf16.msra.mxu0 0
    %946 = vmatprep.subr.bf16.mxu0 0
    %947 = vmatpush1.bf16.msra.mxu0 0
    %948 = vmatprep.subr.bf16.mxu0 0
    %949 = vmatpush1.bf16.msra.mxu0 0
    %950 = vmatprep.subr.bf16.mxu0 0
    %951 = vmatpush1.bf16.msra.mxu0 0
    %952 = vmatprep.subr.bf16.mxu0 0
    %953 = vmatpush1.bf16.msra.mxu0 0
    %954 = vmatprep.subr.bf16.mxu0 0
    %955 = vmatpush1.bf16.msra.mxu0 0
    %956 = vmatprep.subr.bf16.mxu0 0
    %957 = vmatpush1.bf16.msra.mxu0 0
    %958 = vmatprep.subr.bf16.mxu0 0
    %959 = vmatpush1.bf16.msra.mxu0 0
    %960 = vmatprep.subr.bf16.mxu0 0
    %961 = vmatpush1.bf16.msra.mxu0 0
    %962 = vmatprep.subr.bf16.mxu0 0
    %963 = vmatpush1.bf16.msra.mxu0 0
    %964 = vmatprep.subr.bf16.mxu0 0
    %965 = vmatpush1.bf16.msra.mxu0 0
    %966 = vmatprep.subr.bf16.mxu0 0
    %967 = vmatpush1.bf16.msra.mxu0 0
    %968 = vmatprep.mubr.bf16.mxu0 0
    %969 = vmatmul.mubr.bf16.gmra.mrb[0].mxu0 %v934
    %v970 = vpop.f32.mrb[0].mxu0
    %v971 = vadd.f32 0.0, %v970
    %v972 = vpop.f32.mrb[0].mxu0
    %v973 = vpop.f32.mrb[0].mxu0
    %v974 = vpop.f32.mrb[0].mxu0
    %975 = vdwg.mxu0
    %v977 = vrot.slane %v971, 6
    %v979 = vadd.f32 %v25, %v977
    %v980 = vxor.u32 %v979, 2147483648
    %v981 = vmul.f32 %v980, 1.442695
    %v982 = vpow.pop %v981
    %v983 = vadd.f32 %v982, 1.0
    %v984 = vrcp.pop %v983
    %v985 = vmul.f32 1.0, %v984
    %v986 = vtanh.pop %v979
    %v988 = vrot.slane %v848, 6
    %v990 = vmul.f32 %v985, %v988
    %992 = vrot.lane.b32.xlu0 %v986, 32
    %v993 = vpop.permute.xlu0 %992
    %v995 = vmul.f32 %v985, %v993
    %997 = vrot.lane.b32.xlu0 %v995, 32
    %v998 = vpop.permute.xlu0 %997
    %v1000 = vadd.f32 %v990, %v998
    %v1001 = vtanh.pop %v1000
    %1003 = vrot.lane.b32.xlu0 %v1001, 32
    %v1004 = vpop.permute.xlu0 %1003
    %v1006 = vmul.f32 %v985, %v1004
    %vm1007 = vcmp.gt.s32.totalorder %v43, 5
    %v1009 = vrot.slane %v1006, 2
    %1010 = vrot.lane.b32.xlu0 %v1009, 64
    %v1011 = vpop.permute.xlu0 %1010
    %1014 = vrot.lane.b32.xlu0 %v847, 64
    %v1015 = vpop.permute.xlu0 %1014
    %v1017 = vsel %vm1007, %v1011, %v1015
    %v1019 = vrot.slane %v1000, 2
    %1020 = vrot.lane.b32.xlu0 %v1019, 96
    %v1021 = vpop.permute.xlu0 %1020
    %1023 = vrot.lane.b32.xlu0 %v848, 96
    %v1024 = vpop.permute.xlu0 %1023
    %v1026 = vsel %vm1007, %v1021, %v1024
    %v1027 = vpack.c.bf16 %v927, %v927
    %1029 = vrot.lane.b32.xlu0 %v1027, 64
    %v1030 = vpop.permute.xlu0 %1029
    %v1032 = vsel %vm61, %v1030, 0
    %1034 = vmatprep.subr.bf16.mxu0 0
    %1035 = vmatpush1.bf16.msra.mxu0 %v141
    %1036 = vmatprep.subr.bf16.mxu0 0
    %1037 = vmatpush1.bf16.msra.mxu0 %v142
    %1038 = vmatprep.subr.bf16.mxu0 0
    %1039 = vmatpush1.bf16.msra.mxu0 0
    %1040 = vmatprep.subr.bf16.mxu0 0
    %1041 = vmatpush1.bf16.msra.mxu0 0
    %1042 = vmatprep.subr.bf16.mxu0 0
    %1043 = vmatpush1.bf16.msra.mxu0 0
    %1044 = vmatprep.subr.bf16.mxu0 0
    %1045 = vmatpush1.bf16.msra.mxu0 0
    %1046 = vmatprep.subr.bf16.mxu0 0
    %1047 = vmatpush1.bf16.msra.mxu0 0
    %1048 = vmatprep.subr.bf16.mxu0 0
    %1049 = vmatpush1.bf16.msra.mxu0 0
    %1050 = vmatprep.subr.bf16.mxu0 0
    %1051 = vmatpush1.bf16.msra.mxu0 0
    %1052 = vmatprep.subr.bf16.mxu0 0
    %1053 = vmatpush1.bf16.msra.mxu0 0
    %1054 = vmatprep.subr.bf16.mxu0 0
    %1055 = vmatpush1.bf16.msra.mxu0 0
    %1056 = vmatprep.subr.bf16.mxu0 0
    %1057 = vmatpush1.bf16.msra.mxu0 0
    %1058 = vmatprep.subr.bf16.mxu0 0
    %1059 = vmatpush1.bf16.msra.mxu0 0
    %1060 = vmatprep.subr.bf16.mxu0 0
    %1061 = vmatpush1.bf16.msra.mxu0 0
    %1062 = vmatprep.subr.bf16.mxu0 0
    %1063 = vmatpush1.bf16.msra.mxu0 0
    %1064 = vmatprep.subr.bf16.mxu0 0
    %1065 = vmatpush1.bf16.msra.mxu0 0
    %1066 = vmatprep.mubr.bf16.mxu0 0
    %1067 = vmatmul.mubr.bf16.gmra.mrb[0].mxu0 %v1032
    %v1068 = vpop.f32.mrb[0].mxu0
    %v1069 = vadd.f32 0.0, %v1068
    %v1070 = vpop.f32.mrb[0].mxu0
    %v1071 = vpop.f32.mrb[0].mxu0
    %v1072 = vpop.f32.mrb[0].mxu0
    %1073 = vdwg.mxu0
    %v1075 = vrot.slane %v1069, 6
    %v1077 = vadd.f32 %v30, %v1075
    %v1078 = vxor.u32 %v1077, 2147483648
    %v1079 = vmul.f32 %v1078, 1.442695
    %v1080 = vpow.pop %v1079
    %v1081 = vadd.f32 %v1080, 1.0
    %v1082 = vrcp.pop %v1081
    %v1083 = vmul.f32 1.0, %v1082
    %v1084 = vtanh.pop %v1077
    %v1086 = vrot.slane %v928, 6
    %v1088 = vmul.f32 %v1083, %v1086
    %1090 = vrot.lane.b32.xlu0 %v1084, 32
    %v1091 = vpop.permute.xlu0 %1090
    %v1093 = vmul.f32 %v1083, %v1091
    %1095 = vrot.lane.b32.xlu0 %v1093, 32
    %v1096 = vpop.permute.xlu0 %1095
    %v1098 = vadd.f32 %v1088, %v1096
    %v1099 = vtanh.pop %v1098
    %1101 = vrot.lane.b32.xlu0 %v1099, 32
    %v1102 = vpop.permute.xlu0 %1101
    %v1104 = vmul.f32 %v1083, %v1102
    %vm1105 = vcmp.gt.s32.totalorder %v48, 5
    %v1107 = vrot.slane %v1104, 2
    %1108 = vrot.lane.b32.xlu0 %v1107, 64
    %v1109 = vpop.permute.xlu0 %1108
    %1112 = vrot.lane.b32.xlu0 %v927, 64
    %v1113 = vpop.permute.xlu0 %1112
    %v1115 = vsel %vm1105, %v1109, %v1113
    %v1117 = vrot.slane %v1098, 2
    %1118 = vrot.lane.b32.xlu0 %v1117, 96
    %v1119 = vpop.permute.xlu0 %1118
    %1121 = vrot.lane.b32.xlu0 %v928, 96
    %v1122 = vpop.permute.xlu0 %1121
    %v1124 = vsel %vm1105, %v1119, %v1122
    %v1125 = vpack.c.bf16 %v1017, %v1017
    %v1127 = vsel %vm61, %v1125, 0
    %1129 = vmatprep.subr.bf16.mxu0 0
    %1130 = vmatpush1.bf16.msra.mxu0 %v57
    %1131 = vmatprep.subr.bf16.mxu0 0
    %1132 = vmatpush1.bf16.msra.mxu0 %v58
    %1133 = vmatprep.subr.bf16.mxu0 0
    %1134 = vmatpush1.bf16.msra.mxu0 0
    %1135 = vmatprep.subr.bf16.mxu0 0
    %1136 = vmatpush1.bf16.msra.mxu0 0
    %1137 = vmatprep.subr.bf16.mxu0 0
    %1138 = vmatpush1.bf16.msra.mxu0 0
    %1139 = vmatprep.subr.bf16.mxu0 0
    %1140 = vmatpush1.bf16.msra.mxu0 0
    %1141 = vmatprep.subr.bf16.mxu0 0
    %1142 = vmatpush1.bf16.msra.mxu0 0
    %1143 = vmatprep.subr.bf16.mxu0 0
    %1144 = vmatpush1.bf16.msra.mxu0 0
    %1145 = vmatprep.subr.bf16.mxu0 0
    %1146 = vmatpush1.bf16.msra.mxu0 0
    %1147 = vmatprep.subr.bf16.mxu0 0
    %1148 = vmatpush1.bf16.msra.mxu0 0
    %1149 = vmatprep.subr.bf16.mxu0 0
    %1150 = vmatpush1.bf16.msra.mxu0 0
    %1151 = vmatprep.subr.bf16.mxu0 0
    %1152 = vmatpush1.bf16.msra.mxu0 0
    %1153 = vmatprep.subr.bf16.mxu0 0
    %1154 = vmatpush1.bf16.msra.mxu0 0
    %1155 = vmatprep.subr.bf16.mxu0 0
    %1156 = vmatpush1.bf16.msra.mxu0 0
    %1157 = vmatprep.subr.bf16.mxu0 0
    %1158 = vmatpush1.bf16.msra.mxu0 0
    %1159 = vmatprep.subr.bf16.mxu0 0
    %1160 = vmatpush1.bf16.msra.mxu0 0
    %1161 = vmatprep.mubr.bf16.mxu0 0
    %1162 = vmatmul.mubr.bf16.gmra.mrb[0].mxu0 %v1127
    %v1163 = vpop.f32.mrb[0].mxu0
    %v1164 = vadd.f32 0.0, %v1163
    %v1165 = vpop.f32.mrb[0].mxu0
    %v1166 = vpop.f32.mrb[0].mxu0
    %v1167 = vpop.f32.mrb[0].mxu0
    %1168 = vdwg.mxu0
    %v1170 = vrot.slane %v1164, 4
    %v1172 = vadd.f32 %v25, %v1170
    %v1173 = vxor.u32 %v1172, 2147483648
    %v1174 = vmul.f32 %v1173, 1.442695
    %v1175 = vpow.pop %v1174
    %v1176 = vadd.f32 %v1175, 1.0
    %v1177 = vrcp.pop %v1176
    %v1178 = vmul.f32 1.0, %v1177
    %v1179 = vtanh.pop %v1172
    %v1181 = vrot.slane %v1026, 4
    %1182 = vrot.lane.b32.xlu0 %v1181, 32
    %v1183 = vpop.permute.xlu0 %1182
    %v1185 = vmul.f32 %v1178, %v1183
    %1187 = vrot.lane.b32.xlu0 %v1179, 32
    %v1188 = vpop.permute.xlu0 %1187
    %v1190 = vmul.f32 %v1178, %v1188
    %1192 = vrot.lane.b32.xlu0 %v1190, 32
    %v1193 = vpop.permute.xlu0 %1192
    %v1195 = vadd.f32 %v1185, %v1193
    %v1196 = vtanh.pop %v1195
    %1198 = vrot.lane.b32.xlu0 %v1196, 32
    %v1199 = vpop.permute.xlu0 %1198
    %v1201 = vmul.f32 %v1178, %v1199
    %vm1202 = vcmp.gt.s32.totalorder %v43, 6
    %v1204 = vrot.slane %v1201, 4
    %1205 = vrot.lane.b32.xlu0 %v1204, 64
    %v1206 = vpop.permute.xlu0 %1205
    %v1208 = vsel %vm1202, %v1206, %v1017
    %v1210 = vrot.slane %v1195, 4
    %1211 = vrot.lane.b32.xlu0 %v1210, 96
    %v1212 = vpop.permute.xlu0 %1211
    %v1214 = vsel %vm1202, %v1212, %v1026
    %v1215 = vpack.c.bf16 %v1115, %v1115
    %v1217 = vsel %vm61, %v1215, 0
    %1219 = vmatprep.subr.bf16.mxu0 0
    %1220 = vmatpush1.bf16.msra.mxu0 %v141
    %1221 = vmatprep.subr.bf16.mxu0 0
    %1222 = vmatpush1.bf16.msra.mxu0 %v142
    %1223 = vmatprep.subr.bf16.mxu0 0
    %1224 = vmatpush1.bf16.msra.mxu0 0
    %1225 = vmatprep.subr.bf16.mxu0 0
    %1226 = vmatpush1.bf16.msra.mxu0 0
    %1227 = vmatprep.subr.bf16.mxu0 0
    %1228 = vmatpush1.bf16.msra.mxu0 0
    %1229 = vmatprep.subr.bf16.mxu0 0
    %1230 = vmatpush1.bf16.msra.mxu0 0
    %1231 = vmatprep.subr.bf16.mxu0 0
    %1232 = vmatpush1.bf16.msra.mxu0 0
    %1233 = vmatprep.subr.bf16.mxu0 0
    %1234 = vmatpush1.bf16.msra.mxu0 0
    %1235 = vmatprep.subr.bf16.mxu0 0
    %1236 = vmatpush1.bf16.msra.mxu0 0
    %1237 = vmatprep.subr.bf16.mxu0 0
    %1238 = vmatpush1.bf16.msra.mxu0 0
    %1239 = vmatprep.subr.bf16.mxu0 0
    %1240 = vmatpush1.bf16.msra.mxu0 0
    %1241 = vmatprep.subr.bf16.mxu0 0
    %1242 = vmatpush1.bf16.msra.mxu0 0
    %1243 = vmatprep.subr.bf16.mxu0 0
    %1244 = vmatpush1.bf16.msra.mxu0 0
    %1245 = vmatprep.subr.bf16.mxu0 0
    %1246 = vmatpush1.bf16.msra.mxu0 0
    %1247 = vmatprep.subr.bf16.mxu0 0
    %1248 = vmatpush1.bf16.msra.mxu0 0
    %1249 = vmatprep.subr.bf16.mxu0 0
    %1250 = vmatpush1.bf16.msra.mxu0 0
    %1251 = vmatprep.mubr.bf16.mxu0 0
    %1252 = vmatmul.mubr.bf16.gmra.mrb[0].mxu0 %v1217
    %v1253 = vpop.f32.mrb[0].mxu0
    %v1254 = vadd.f32 0.0, %v1253
    %v1255 = vpop.f32.mrb[0].mxu0
    %v1256 = vpop.f32.mrb[0].mxu0
    %v1257 = vpop.f32.mrb[0].mxu0
    %1258 = vdwg.mxu0
    %v1260 = vrot.slane %v1254, 4
    %v1262 = vadd.f32 %v30, %v1260
    %v1263 = vxor.u32 %v1262, 2147483648
    %v1264 = vmul.f32 %v1263, 1.442695
    %v1265 = vpow.pop %v1264
    %v1266 = vadd.f32 %v1265, 1.0
    %v1267 = vrcp.pop %v1266
    %v1268 = vmul.f32 1.0, %v1267
    %v1269 = vtanh.pop %v1262
    %v1271 = vrot.slane %v1124, 4
    %1272 = vrot.lane.b32.xlu0 %v1271, 32
    %v1273 = vpop.permute.xlu0 %1272
    %v1275 = vmul.f32 %v1268, %v1273
    %1277 = vrot.lane.b32.xlu0 %v1269, 32
    %v1278 = vpop.permute.xlu0 %1277
    %v1280 = vmul.f32 %v1268, %v1278
    %1282 = vrot.lane.b32.xlu0 %v1280, 32
    %v1283 = vpop.permute.xlu0 %1282
    %v1285 = vadd.f32 %v1275, %v1283
    %v1286 = vtanh.pop %v1285
    %1288 = vrot.lane.b32.xlu0 %v1286, 32
    %v1289 = vpop.permute.xlu0 %1288
    %v1291 = vmul.f32 %v1268, %v1289
    %vm1292 = vcmp.gt.s32.totalorder %v48, 6
    %v1294 = vrot.slane %v1291, 4
    %1295 = vrot.lane.b32.xlu0 %v1294, 64
    %v1296 = vpop.permute.xlu0 %1295
    %v1298 = vsel %vm1292, %v1296, %v1115
    %v1300 = vrot.slane %v1285, 4
    %1301 = vrot.lane.b32.xlu0 %v1300, 96
    %v1302 = vpop.permute.xlu0 %1301
    %v1304 = vsel %vm1292, %v1302, %v1124
    %v1305 = vpack.c.bf16 %v1208, %v1208
    %v1307 = vsel %vm61, %v1305, 0
    %1309 = vmatprep.subr.bf16.mxu0 0
    %1310 = vmatpush1.bf16.msra.mxu0 %v57
    %1311 = vmatprep.subr.bf16.mxu0 0
    %1312 = vmatpush1.bf16.msra.mxu0 %v58
    %1313 = vmatprep.subr.bf16.mxu0 0
    %1314 = vmatpush1.bf16.msra.mxu0 0
    %1315 = vmatprep.subr.bf16.mxu0 0
    %1316 = vmatpush1.bf16.msra.mxu0 0
    %1317 = vmatprep.subr.bf16.mxu0 0
    %1318 = vmatpush1.bf16.msra.mxu0 0
    %1319 = vmatprep.subr.bf16.mxu0 0
    %1320 = vmatpush1.bf16.msra.mxu0 0
    %1321 = vmatprep.subr.bf16.mxu0 0
    %1322 = vmatpush1.bf16.msra.mxu0 0
    %1323 = vmatprep.subr.bf16.mxu0 0
    %1324 = vmatpush1.bf16.msra.mxu0 0
    %1325 = vmatprep.subr.bf16.mxu0 0
    %1326 = vmatpush1.bf16.msra.mxu0 0
    %1327 = vmatprep.subr.bf16.mxu0 0
    %1328 = vmatpush1.bf16.msra.mxu0 0
    %1329 = vmatprep.subr.bf16.mxu0 0
    %1330 = vmatpush1.bf16.msra.mxu0 0
    %1331 = vmatprep.subr.bf16.mxu0 0
    %1332 = vmatpush1.bf16.msra.mxu0 0
    %1333 = vmatprep.subr.bf16.mxu0 0
    %1334 = vmatpush1.bf16.msra.mxu0 0
    %1335 = vmatprep.subr.bf16.mxu0 0
    %1336 = vmatpush1.bf16.msra.mxu0 0
    %1337 = vmatprep.subr.bf16.mxu0 0
    %1338 = vmatpush1.bf16.msra.mxu0 0
    %1339 = vmatprep.subr.bf16.mxu0 0
    %1340 = vmatpush1.bf16.msra.mxu0 0
    %1341 = vmatprep.mubr.bf16.mxu0 0
    %1342 = vmatmul.mubr.bf16.gmra.mrb[0].mxu0 %v1307
    %v1343 = vpop.f32.mrb[0].mxu0
    %v1344 = vadd.f32 0.0, %v1343
    %v1345 = vpop.f32.mrb[0].mxu0
    %v1346 = vpop.f32.mrb[0].mxu0
    %v1347 = vpop.f32.mrb[0].mxu0
    %1348 = vdwg.mxu0
    %v1350 = vrot.slane %v1344, 2
    %v1352 = vadd.f32 %v25, %v1350
    %v1353 = vxor.u32 %v1352, 2147483648
    %v1354 = vmul.f32 %v1353, 1.442695
    %v1355 = vpow.pop %v1354
    %v1356 = vadd.f32 %v1355, 1.0
    %v1357 = vrcp.pop %v1356
    %v1358 = vmul.f32 1.0, %v1357
    %v1359 = vtanh.pop %v1352
    %v1361 = vrot.slane %v1214, 2
    %1362 = vrot.lane.b32.xlu0 %v1361, 32
    %v1363 = vpop.permute.xlu0 %1362
    %v1365 = vmul.f32 %v1358, %v1363
    %1367 = vrot.lane.b32.xlu0 %v1359, 32
    %v1368 = vpop.permute.xlu0 %1367
    %v1370 = vmul.f32 %v1358, %v1368
    %1372 = vrot.lane.b32.xlu0 %v1370, 32
    %v1373 = vpop.permute.xlu0 %1372
    %v1375 = vadd.f32 %v1365, %v1373
    %v1376 = vtanh.pop %v1375
    %1378 = vrot.lane.b32.xlu0 %v1376, 32
    %v1379 = vpop.permute.xlu0 %1378
    %v1381 = vmul.f32 %v1358, %v1379
    %vm1382 = vcmp.gt.s32.totalorder %v43, 7
    %v1384 = vrot.slane %v1381, 6
    %1385 = vrot.lane.b32.xlu0 %v1384, 64
    %v1386 = vpop.permute.xlu0 %1385
    %v1388 = vsel %vm1382, %v1386, %v1208
    %v1389 = vpack.c.bf16 %v1298, %v1298
    %v1391 = vsel %vm61, %v1389, 0
    %1393 = vmatprep.subr.bf16.mxu0 0
    %1394 = vmatpush1.bf16.msra.mxu0 %v141
    %1395 = vmatprep.subr.bf16.mxu0 0
    %1396 = vmatpush1.bf16.msra.mxu0 %v142
    %1397 = vmatprep.subr.bf16.mxu0 0
    %1398 = vmatpush1.bf16.msra.mxu0 0
    %1399 = vmatprep.subr.bf16.mxu0 0
    %1400 = vmatpush1.bf16.msra.mxu0 0
    %1401 = vmatprep.subr.bf16.mxu0 0
    %1402 = vmatpush1.bf16.msra.mxu0 0
    %1403 = vmatprep.subr.bf16.mxu0 0
    %1404 = vmatpush1.bf16.msra.mxu0 0
    %1405 = vmatprep.subr.bf16.mxu0 0
    %1406 = vmatpush1.bf16.msra.mxu0 0
    %1407 = vmatprep.subr.bf16.mxu0 0
    %1408 = vmatpush1.bf16.msra.mxu0 0
    %1409 = vmatprep.subr.bf16.mxu0 0
    %1410 = vmatpush1.bf16.msra.mxu0 0
    %1411 = vmatprep.subr.bf16.mxu0 0
    %1412 = vmatpush1.bf16.msra.mxu0 0
    %1413 = vmatprep.subr.bf16.mxu0 0
    %1414 = vmatpush1.bf16.msra.mxu0 0
    %1415 = vmatprep.subr.bf16.mxu0 0
    %1416 = vmatpush1.bf16.msra.mxu0 0
    %1417 = vmatprep.subr.bf16.mxu0 0
    %1418 = vmatpush1.bf16.msra.mxu0 0
    %1419 = vmatprep.subr.bf16.mxu0 0
    %1420 = vmatpush1.bf16.msra.mxu0 0
    %1421 = vmatprep.subr.bf16.mxu0 0
    %1422 = vmatpush1.bf16.msra.mxu0 0
    %1423 = vmatprep.subr.bf16.mxu0 0
    %1424 = vmatpush1.bf16.msra.mxu0 0
    %1425 = vmatprep.mubr.bf16.mxu0 0
    %1426 = vmatmul.mubr.bf16.gmra.mrb[0].mxu0 %v1391
    %v1427 = vpop.f32.mrb[0].mxu0
    %v1428 = vadd.f32 0.0, %v1427
    %v1429 = vpop.f32.mrb[0].mxu0
    %v1430 = vpop.f32.mrb[0].mxu0
    %v1431 = vpop.f32.mrb[0].mxu0
    %1432 = vdwg.mxu0
    %v1434 = vrot.slane %v1428, 2
    %v1436 = vadd.f32 %v30, %v1434
    %v1437 = vxor.u32 %v1436, 2147483648
    %v1438 = vmul.f32 %v1437, 1.442695
    %v1439 = vpow.pop %v1438
    %v1440 = vadd.f32 %v1439, 1.0
    %v1441 = vrcp.pop %v1440
    %v1442 = vmul.f32 1.0, %v1441
    %v1443 = vtanh.pop %v1436
    %v1445 = vrot.slane %v1304, 2
    %1446 = vrot.lane.b32.xlu0 %v1445, 32
    %v1447 = vpop.permute.xlu0 %1446
    %v1449 = vmul.f32 %v1442, %v1447
    %1451 = vrot.lane.b32.xlu0 %v1443, 32
    %v1452 = vpop.permute.xlu0 %1451
    %v1454 = vmul.f32 %v1442, %v1452
    %1456 = vrot.lane.b32.xlu0 %v1454, 32
    %v1457 = vpop.permute.xlu0 %1456
    %v1459 = vadd.f32 %v1449, %v1457
    %v1460 = vtanh.pop %v1459
    %1462 = vrot.lane.b32.xlu0 %v1460, 32
    %v1463 = vpop.permute.xlu0 %1462
    %v1465 = vmul.f32 %v1442, %v1463
    %vm1466 = vcmp.gt.s32.totalorder %v48, 7
    %v1468 = vrot.slane %v1465, 6
    %1469 = vrot.lane.b32.xlu0 %v1468, 64
    %v1470 = vpop.permute.xlu0 %1469
    %v1472 = vsel %vm1466, %v1470, %v1298
    %1474 = vrot.lane.b32.xlu0 %v1472, 32
    %v1475 = vpop.permute.xlu0 %1474
    %v1477 = vsel %vm61, %v1388, %v1475
    %v1478 = vld [vmem:[%s3] sm:$0xff]
    %v1479 = vld [vmem:[%s3 + $0x8] sm:$0xff]
    %v1480 = vld [vmem:[%s3 + $0x10] sm:$0xff]
    %v1481 = vld [vmem:[%s3 + $0x18] sm:$0xff]
    %v1482 = vld [vmem:[%s3 + $0x20] sm:$0xff]
    %v1483 = vld [vmem:[%s3 + $0x28] sm:$0xff]
    %v1484 = vld [vmem:[%s3 + $0x30] sm:$0xff]
    %v1485 = vld [vmem:[%s3 + $0x38] sm:$0xff]
    %v1486 = vld [vmem:[%s4] sm:$0x1]
    %v1488 = vlaneseq
    %v1489 = vshrl.u32 %v1488, 7
    %v1490 = vsub.s32 0, %v1489
    %v1491 = vrot.slane %v1486, %v1490
    %vm1493 = vcmask 523264
    %v1495 = vsel %vm1493, %v1477, 0
    %1497 = vmatprep.subr.mxu0 0.0
    %1498 = vmatpush1.msra.mxu0 %v1478
    %1499 = vmatprep.subr.mxu0 0.0
    %1500 = vmatpush1.msra.mxu0 %v1479
    %1501 = vmatprep.subr.mxu0 0.0
    %1502 = vmatpush1.msra.mxu0 %v1480
    %1503 = vmatprep.subr.mxu0 0.0
    %1504 = vmatpush1.msra.mxu0 %v1481
    %1505 = vmatprep.subr.mxu0 0.0
    %1506 = vmatpush1.msra.mxu0 %v1482
    %1507 = vmatprep.subr.mxu0 0.0
    %1508 = vmatpush1.msra.mxu0 %v1483
    %1509 = vmatprep.subr.mxu0 0.0
    %1510 = vmatpush1.msra.mxu0 %v1484
    %1511 = vmatprep.subr.mxu0 0.0
    %1512 = vmatpush1.msra.mxu0 %v1485
    %1513 = vmatprep.subr.mxu0 0.0
    %1514 = vmatpush1.msra.mxu0 0.0
    %1515 = vmatprep.subr.mxu0 0.0
    %1516 = vmatpush1.msra.mxu0 0.0
    %1517 = vmatprep.subr.mxu0 0.0
    %1518 = vmatpush1.msra.mxu0 0.0
    %1519 = vmatprep.subr.mxu0 0.0
    %1520 = vmatpush1.msra.mxu0 0.0
    %1521 = vmatprep.subr.mxu0 0.0
    %1522 = vmatpush1.msra.mxu0 0.0
    %1523 = vmatprep.subr.mxu0 0.0
    %1524 = vmatpush1.msra.mxu0 0.0
    %1525 = vmatprep.subr.mxu0 0.0
    %1526 = vmatpush1.msra.mxu0 0.0
    %1527 = vmatprep.subr.mxu0 0.0
    %1528 = vmatpush1.msra.mxu0 0.0
    %1529 = vmatprep.subr.mxu0 0.0
    %1530 = vmatpush1.msra.mxu0 0.0
    %1531 = vmatprep.subr.mxu0 0.0
    %1532 = vmatpush1.msra.mxu0 0.0
    %1533 = vmatprep.subr.mxu0 0.0
    %1534 = vmatpush1.msra.mxu0 0.0
    %1535 = vmatprep.subr.mxu0 0.0
    %1536 = vmatpush1.msra.mxu0 0.0
    %1537 = vmatprep.subr.mxu0 0.0
    %1538 = vmatpush1.msra.mxu0 0.0
    %1539 = vmatprep.subr.mxu0 0.0
    %1540 = vmatpush1.msra.mxu0 0.0
    %1541 = vmatprep.subr.mxu0 0.0
    %1542 = vmatpush1.msra.mxu0 0.0
    %1543 = vmatprep.subr.mxu0 0.0
    %1544 = vmatpush1.msra.mxu0 0.0
    %1545 = vmatprep.subr.mxu0 0.0
    %1546 = vmatpush1.msra.mxu0 0.0
    %1547 = vmatprep.subr.mxu0 0.0
    %1548 = vmatpush1.msra.mxu0 0.0
    %1549 = vmatprep.subr.mxu0 0.0
    %1550 = vmatpush1.msra.mxu0 0.0
    %1551 = vmatprep.subr.mxu0 0.0
    %1552 = vmatpush1.msra.mxu0 0.0
    %1553 = vmatprep.subr.mxu0 0.0
    %1554 = vmatpush1.msra.mxu0 0.0
    %1555 = vmatprep.subr.mxu0 0.0
    %1556 = vmatpush1.msra.mxu0 0.0
    %1557 = vmatprep.subr.mxu0 0.0
    %1558 = vmatpush1.msra.mxu0 0.0
    %1559 = vmatprep.subr.mxu0 0.0
    %1560 = vmatpush1.msra.mxu0 0.0
    %1561 = vmatprep.mubr.f32.mxu0 0.0
    %1562 = vmatmul.mubr.f32.gmra.mrb[0].mxu0 %v1495
    %v1563 = vpop.f32.mrb[0].mxu0
    %v1564 = vadd.f32 %v1491, %v1563
    %v1565 = vpop.f32.mrb[0].mxu0
    %1566 = vdwg.mxu0
    %1567 = vst [vmem:[#allocation2] sm:$0x3] %v1564
    // Predicated region
    $region22: #{tc_lstm_forward.1} parent=1 // pred_check
      _
    $region23: #{tc_lstm_forward.1} parent=1 // pred_check_branch
      %1569 = sbr.rel (0) target = $region25
    $region24: #{tc_lstm_forward.1} parent=1 // pred_region
      %s1571 = ssub.s32 32, 32
      %1572 = vsyncadd [#allocation3], %s1571
      %s1574 = sshll.u32 [#allocation2], 4
      %s1575 = int_to_ptr.vmem [resolvable:$true] %s1574
      %1577 = dma.vmem_to_hbm [thread:$0]  %s1575, 32, %s5, [#allocation3]
    $region25: #{tc_lstm_forward.1} parent=1 // pred_fallthru
      _
    // Predicated region
    $region26: #{tc_lstm_forward.1} parent=1 // pred_check
      _
    $region27: #{tc_lstm_forward.1} parent=1 // pred_check_branch
      %1579 = sbr.rel (0) target = $region29
    $region28: #{tc_lstm_forward.1} parent=1 // pred_region
      %1580 = dma.done [#allocation3], 32
    $region29: #{tc_lstm_forward.1} parent=1 // pred_fallthru
      _
    %1581 = vsyncpa [#allocation3], 1

</llo_original>
